<compile_context>
chip_gen: v5e
topology: v5e:2x2
jax: 0.10.0
libtpu: 0.0.40
codegen_flags: <defaults>
</compile_context>

<pallas_src>
import functools

import jax
import jax.numpy as jnp
from jax.experimental import pallas as pl
from jax.experimental.pallas import tpu as pltpu

F32 = jnp.float32
BF16 = jnp.bfloat16


# ----------------------------------------------------------------------------
# In-kernel helpers (traced inline; operate on VMEM-resident values)
# ----------------------------------------------------------------------------
def _split_heads(x, num_heads, dh):
    """(rows, H*dh) -> (H, rows, dh).

    Static lane slices stacked along a new leading (untiled) axis: one-time
    relayout; all subsequent attention math is head-batched, so there is no
    per-head lane slicing inside the hot loops.
    """
    return jnp.stack([x[:, i * dh:(i + 1) * dh] for i in range(num_heads)],
                     axis=0)


def _multihead_ppr_attention(h, wqkv, adj, rel_bias_fn,
                             *, num_heads, dh, hop_num, alpha):
    """h: (N, D_in) f32; wqkv: (D_in, 3*H*dh) bf16 (Q|K|V head-concatenated).

    Returns the (N, H*dh) lane-dense multi-head PPR-diffusion result.
    rel_bias_fn(q3) -> (H, N, N) additive bias, or None (relation-free GDT
    layers).
    """
    hdh = num_heads * dh
    scale = 1.0 / float(dh) ** 0.5

    # One fused Q|K|V projection (3x MXU lane utilization, single pass over h).
    qkv = jnp.dot(h.astype(BF16), wqkv, preferred_element_type=F32)  # (N, 3*H*dh)
    # Fold the 1/sqrt(dh) scale into Q so both QK^T and the relation bias
    # inherit it (same semantics as (scores + rel_bias) * scale).
    q = qkv[:, :hdh] * scale
    k = qkv[:, hdh:2 * hdh]
    v = qkv[:, 2 * hdh:]

    q3 = _split_heads(q, num_heads, dh)                               # (H, N, dh)
    k3 = _split_heads(k, num_heads, dh)
    v3 = _split_heads(v, num_heads, dh)

    # Head-batched QK^T: score[h, dst, src] = q_dst . k_src (scaled).
    s = jnp.einsum('hnd,hmd->hnm', q3.astype(BF16), k3.astype(BF16),
                   preferred_element_type=F32)                        # (H, N, N)
    if rel_bias_fn is not None:
        s = s + rel_bias_fn(q3)

    mask = (adj > 0)[None, :, :]                                      # (1, N, N)
    s = jnp.where(mask, s, -1e30)

    # edge_softmax over incoming edges (src axis) for each dst row (f32).
    m = jnp.max(s, axis=-1, keepdims=True)                            # (H, N, 1)
    p = jnp.exp(s - m)                          # masked entries underflow to 0
    denom = jnp.maximum(jnp.sum(p, axis=-1, keepdims=True), 1e-30)
    a = p * pl.reciprocal(denom, approx=True)                         # (H, N, N)
    # dst rows with no incoming edges (row max is still -1e30): no messages.
    a = jnp.where(m > -1e29, a, 0.0)

    # PPR diffusion: feat <- (1-alpha) * A @ feat + alpha * feat_0 (head-batched)
    a_scaled = ((1.0 - alpha) * a).astype(BF16)
    av = alpha * v3
    feat = v3
    for _ in range(hop_num):                                          # static unroll
        feat = jnp.einsum('hnm,hmd->hnd', a_scaled, feat.astype(BF16),
                          preferred_element_type=F32) + av

    # Single lane-dense head concatenation (no scratch round-trip, no masked
    # per-head stores).
    return jnp.concatenate([feat[i] for i in range(num_heads)], axis=-1)  # (N, H*dh)


def _residual_ffn_ln(x, res, g1, b1, w1, bb1, w2, bb2, g2, b2):
    """residual add -> LayerNorm -> FFN(ReLU) -> residual -> LayerNorm."""
    eps = 1e-5
    x = x + res

    mu = jnp.mean(x, axis=-1, keepdims=True)
    var = jnp.mean((x - mu) ** 2, axis=-1, keepdims=True)
    xn = (x - mu) * jax.lax.rsqrt(var + eps)
    xn = xn * g1 + b1                                                 # LN1

    hdd = jnp.dot(xn.astype(BF16), w1, preferred_element_type=F32) + bb1
    hdd = jnp.maximum(hdd, 0.0)                                       # ReLU
    y = jnp.dot(hdd.astype(BF16), w2, preferred_element_type=F32) + bb2

    z = xn + y                                                        # FFN residual
    mu2 = jnp.mean(z, axis=-1, keepdims=True)
    var2 = jnp.mean((z - mu2) ** 2, axis=-1, keepdims=True)
    zn = (z - mu2) * jax.lax.rsqrt(var2 + eps)
    return zn * g2 + b2                                               # LN2


# ----------------------------------------------------------------------------
# Fused per-layer kernels
# ----------------------------------------------------------------------------
def rgdt_layer_kernel(h_ref, r_ref, wqkv_ref, wr_ref, adj_ref, relmap_ref,
                      g1_ref, b1_ref, w1_ref, bb1_ref, w2_ref, bb2_ref,
                      g2_ref, b2_ref, out_ref,
                      *, num_heads, dh, hop_num, alpha, num_relations):
    h = h_ref[...]
    adj = adj_ref[...]
    rel_map = relmap_ref[...]                                         # (N, N) int32
    # Relation keys for all heads at once: (R, H*dh) -> head-major (H, R, dh)
    rk = jnp.dot(r_ref[...], wr_ref[...], preferred_element_type=F32)
    rk3 = _split_heads(rk, num_heads, dh)

    def rel_bias(q3):
        # per-(head, dst, relation) score; q3 already carries the 1/sqrt(dh)
        # scale.  dst lives on the sublane axis so the per-relation column is
        # broadcast over src lanes without any lane<->sublane transpose.
        rel_scores = jnp.einsum('hnd,hrd->hnr', q3.astype(BF16), rk3.astype(BF16),
                                preferred_element_type=F32)           # (H, N, R)
        # R-way static select-accumulate over the int relation-type map
        # (replaces the dense (R, N, N) float32 one-hot and its VPU mul-adds).
        bias = jnp.zeros((num_heads,) + rel_map.shape, F32)           # (H, N, N)
        for r in range(num_relations):                                # static unroll
            bias = bias + jnp.where(rel_map == r,
                                    rel_scores[:, :, r:r + 1], 0.0)
        return bias

    rst = _multihead_ppr_attention(h, wqkv_ref[...], adj, rel_bias,
                                   num_heads=num_heads, dh=dh,
                                   hop_num=hop_num, alpha=alpha)
    out_ref[...] = _residual_ffn_ln(rst, h,
                                    g1_ref[...], b1_ref[...],
                                    w1_ref[...], bb1_ref[...],
                                    w2_ref[...], bb2_ref[...],
                                    g2_ref[...], b2_ref[...])


def gdt_layer_kernel(h_ref, wqkv_ref, adj_ref,
                     g1_ref, b1_ref, w1_ref, bb1_ref, w2_ref, bb2_ref,
                     g2_ref, b2_ref, out_ref,
                     *, num_heads, dh, hop_num, alpha):
    h = h_ref[...]
    adj = adj_ref[...]
    rst = _multihead_ppr_attention(h, wqkv_ref[...], adj, None,
                                   num_heads=num_heads, dh=dh,
                                   hop_num=hop_num, alpha=alpha)
    out_ref[...] = _residual_ffn_ln(rst, h,
                                    g1_ref[...], b1_ref[...],
                                    w1_ref[...], bb1_ref[...],
                                    w2_ref[...], bb2_ref[...],
                                    g2_ref[...], b2_ref[...])


# ----------------------------------------------------------------------------
# Wrappers (no grid: whole arrays VMEM-resident, no double-buffering)
# ----------------------------------------------------------------------------
def _vmem_specs(n):
    return [pl.BlockSpec(memory_space=pltpu.MemorySpace.VMEM) for _ in range(n)]


def rgdt_layer(h, r_h, wqkv, wr, adj, rel_map,
               g1, b1, w1, bb1, w2, bb2, g2, b2,
               *, num_heads, hop_num, alpha, num_relations):
    N, d_in = h.shape
    hdh = wqkv.shape[1] // 3
    dh = hdh // num_heads
    # TODO(synk): add a residual input projection when d_in != hidden_dim.
    assert d_in == hdh, "residual path assumes node_emb_dim == hidden_dim"

    kernel = functools.partial(rgdt_layer_kernel, num_heads=num_heads, dh=dh,
                               hop_num=hop_num, alpha=alpha,
                               num_relations=num_relations)
    args = (h, r_h, wqkv, wr, adj, rel_map, g1, b1, w1, bb1, w2, bb2, g2, b2)
    return pl.pallas_call(
        kernel,
        out_shape=jax.ShapeDtypeStruct((N, hdh), F32),
        in_specs=_vmem_specs(len(args)),
        out_specs=pl.BlockSpec(memory_space=pltpu.MemorySpace.VMEM),
    )(*args)


def gdt_layer(h, wqkv, adj,
              g1, b1, w1, bb1, w2, bb2, g2, b2,
              *, num_heads, hop_num, alpha):
    N, d_in = h.shape
    hdh = wqkv.shape[1] // 3
    dh = hdh // num_heads
    assert d_in == hdh, "GDT layers operate at hidden_dim"

    kernel = functools.partial(gdt_layer_kernel, num_heads=num_heads, dh=dh,
                               hop_num=hop_num, alpha=alpha)
    args = (h, wqkv, adj, g1, b1, w1, bb1, w2, bb2, g2, b2)
    return pl.pallas_call(
        kernel,
        out_shape=jax.ShapeDtypeStruct((N, hdh), F32),
        in_specs=_vmem_specs(len(args)),
        out_specs=pl.BlockSpec(memory_space=pltpu.MemorySpace.VMEM),
    )(*args)


# ----------------------------------------------------------------------------
# Encoder configuration / parameters / forward
# ----------------------------------------------------------------------------
class Config:
    num_entities = 32
    num_relations = 8
    node_emb_dim = 32
    rel_emb_dim = 32        # == node_emb_dim -> first branch of RGDTEncoder.__init__
    proj_emb_dim = -1
    hidden_dim = 32
    head_num = 4
    gnn_hop_num = 3
    alpha = 0.15
    layers = 2
    feat_drop = 0.0
    attn_drop = 0.0
    edge_drop = 0.0
    rescale_res = False
    residual = True
    ppr_diff = True


def init_params(key, cfg: Config):
    H = cfg.head_num
    dh = cfg.hidden_dim // H
    d_ff = 4 * cfg.hidden_dim

    def dense(k, shape, fan_in):
        return jax.random.normal(k, shape, F32) / jnp.sqrt(float(fan_in))

    keys = jax.random.split(key, 4 + cfg.layers)
    params = {
        "ent_emb": dense(keys[0], (cfg.num_entities, cfg.node_emb_dim), cfg.node_emb_dim),
        "rel_emb": dense(keys[1], (cfg.num_relations, cfg.rel_emb_dim), cfg.rel_emb_dim),
        "layers": [],
    }
    for li in range(cfg.layers):
        lk = jax.random.split(keys[4 + li], 8)
        d_in = cfg.node_emb_dim if li == 0 else cfg.hidden_dim
        layer = {
            "wq": dense(lk[0], (H, d_in, dh), d_in),
            "wk": dense(lk[1], (H, d_in, dh), d_in),
            "wv": dense(lk[2], (H, d_in, dh), d_in),
            "ln1_g": jnp.ones((1, cfg.hidden_dim), F32),
            "ln1_b": jnp.zeros((1, cfg.hidden_dim), F32),
            "ffn_w1": dense(lk[4], (cfg.hidden_dim, d_ff), cfg.hidden_dim),
            "ffn_b1": jnp.zeros((1, d_ff), F32),
            "ffn_w2": dense(lk[5], (d_ff, cfg.hidden_dim), d_ff),
            "ffn_b2": jnp.zeros((1, cfg.hidden_dim), F32),
            "ln2_g": jnp.ones((1, cfg.hidden_dim), F32),
            "ln2_b": jnp.zeros((1, cfg.hidden_dim), F32),
        }
        if li == 0:
            # relation projection only exists on the first (RGDT) layer
            layer["wr"] = dense(lk[3], (H, cfg.rel_emb_dim, dh), cfg.rel_emb_dim)
        params["layers"].append(layer)
    return params


def rgdt_encoder_forward(params, adj, rel_map, cfg: Config):
    N = adj.shape[0]
    H = cfg.head_num
    dh = cfg.hidden_dim // H

    # e_h = ent_ember(arange(num_nodes));  r_h = rel_ember(arange(num_relations))
    e_h = params["ent_emb"][:N]
    r_h = params["rel_emb"].astype(BF16)          # matmul operand only
    adj_b = adj.astype(BF16)                      # only used as an edge mask
    rel_map = rel_map.astype(jnp.int32)

    def cat_heads(w):  # (H, d_in, dh) -> (d_in, H*dh), head-major columns
        return jnp.transpose(w, (1, 0, 2)).reshape(w.shape[1], H * dh)

    h = e_h
    for li, lp in enumerate(params["layers"]):
        # Fused Q|K|V weight (d_in, 3*H*dh), bf16 MXU operand.
        wqkv = jnp.concatenate(
            [cat_heads(lp["wq"]), cat_heads(lp["wk"]), cat_heads(lp["wv"])],
            axis=-1).astype(BF16)
        w1 = lp["ffn_w1"].astype(BF16)
        w2 = lp["ffn_w2"].astype(BF16)
        if li == 0:
            wr = cat_heads(lp["wr"]).astype(BF16)
            h = rgdt_layer(h, r_h, wqkv, wr, adj_b, rel_map,
                           lp["ln1_g"], lp["ln1_b"], w1, lp["ffn_b1"],
                           w2, lp["ffn_b2"], lp["ln2_g"], lp["ln2_b"],
                           num_heads=H, hop_num=cfg.gnn_hop_num,
                           alpha=cfg.alpha, num_relations=cfg.num_relations)
        else:
            h = gdt_layer(h, wqkv, adj_b,
                          lp["ln1_g"], lp["ln1_b"], w1, lp["ffn_b1"],
                          w2, lp["ffn_b2"], lp["ln2_g"], lp["ln2_b"],
                          num_heads=H, hop_num=cfg.gnn_hop_num, alpha=cfg.alpha)
    return h


# ----------------------------------------------------------------------------
if __name__ == "__main__":
    cfg = Config()
    N = 16  # number of nodes in the example graph

    key = jax.random.PRNGKey(0)
    k_param, k_adj, k_rel = jax.random.split(key, 3)

    params = init_params(k_param, cfg)

    # deterministic small graph: random sparse adjacency + self loops
    adj = (jax.random.uniform(k_adj, (N, N)) < 0.3).astype(jnp.float32)
    adj = jnp.maximum(adj, jnp.eye(N, dtype=jnp.float32))             # adj[dst, src]
    # integer relation-type map (replaces the dense (R, N, N) one-hot)
    rel_map = jax.random.randint(k_rel, (N, N), 0, cfg.num_relations).astype(jnp.int32)

    out = rgdt_encoder_forward(params, adj, rel_map, cfg)
    out = jax.block_until_ready(out)

    assert out.shape == (N, cfg.hidden_dim), out.shape
    assert bool(jnp.all(jnp.isfinite(out)))
    print("KERNEL_OK")
</pallas_src>

<mosaic_0001>
module attributes {stable_mosaic.version = 11 : i64} {
  func.func @rgdt_layer_kernel(%arg0: memref<16x32xf32, #tpu.memory_space<vmem>>, %arg1: memref<8x32xbf16, #tpu.memory_space<vmem>>, %arg2: memref<32x96xbf16, #tpu.memory_space<vmem>>, %arg3: memref<32x32xbf16, #tpu.memory_space<vmem>>, %arg4: memref<16x16xbf16, #tpu.memory_space<vmem>>, %arg5: memref<16x16xi32, #tpu.memory_space<vmem>>, %arg6: memref<1x32xf32, #tpu.memory_space<vmem>>, %arg7: memref<1x32xf32, #tpu.memory_space<vmem>>, %arg8: memref<32x128xbf16, #tpu.memory_space<vmem>>, %arg9: memref<1x128xf32, #tpu.memory_space<vmem>>, %arg10: memref<128x32xbf16, #tpu.memory_space<vmem>>, %arg11: memref<1x32xf32, #tpu.memory_space<vmem>>, %arg12: memref<1x32xf32, #tpu.memory_space<vmem>>, %arg13: memref<1x32xf32, #tpu.memory_space<vmem>>, %arg14: memref<16x32xf32, #tpu.memory_space<vmem>>) attributes {dimension_semantics = [], scalar_prefetch = 0 : i64, scratch_operands = 0 : i64, tpu.core_type = #tpu.core_type<tc>} {
    %c0 = arith.constant 0 : index
    %c0_0 = arith.constant 0 : index
    %0 = vector.load %arg0[%c0, %c0_0] : memref<16x32xf32, #tpu.memory_space<vmem>>, vector<16x32xf32>
    %c0_1 = arith.constant 0 : index
    %c0_2 = arith.constant 0 : index
    %1 = vector.load %arg4[%c0_1, %c0_2] : memref<16x16xbf16, #tpu.memory_space<vmem>>, vector<16x16xbf16>
    %c0_3 = arith.constant 0 : index
    %c0_4 = arith.constant 0 : index
    %2 = vector.load %arg5[%c0_3, %c0_4] : memref<16x16xi32, #tpu.memory_space<vmem>>, vector<16x16xi32>
    %c0_5 = arith.constant 0 : index
    %c0_6 = arith.constant 0 : index
    %3 = vector.load %arg1[%c0_5, %c0_6] : memref<8x32xbf16, #tpu.memory_space<vmem>>, vector<8x32xbf16>
    %c0_7 = arith.constant 0 : index
    %c0_8 = arith.constant 0 : index
    %4 = vector.load %arg3[%c0_7, %c0_8] : memref<32x32xbf16, #tpu.memory_space<vmem>>, vector<32x32xbf16>
    %cst = arith.constant dense<0.000000e+00> : vector<8x32xf32>
    %5 = tpu.matmul %3, %4, %cst {dimension_numbers = #tpu.dot_dimension_numbers<[1], [0], [0], [1], [0, 0, 1, 1], [], []>} : vector<8x32xbf16>, vector<32x32xbf16>, vector<8x32xf32> -> vector<8x32xf32>
    %6 = vector.extract_strided_slice %5 {offsets = [0, 0], sizes = [8, 8], strides = [1, 1]} : vector<8x32xf32> to vector<8x8xf32>
    %7 = vector.extract_strided_slice %5 {offsets = [0, 8], sizes = [8, 8], strides = [1, 1]} : vector<8x32xf32> to vector<8x8xf32>
    %8 = vector.extract_strided_slice %5 {offsets = [0, 16], sizes = [8, 8], strides = [1, 1]} : vector<8x32xf32> to vector<8x8xf32>
    %9 = vector.extract_strided_slice %5 {offsets = [0, 24], sizes = [8, 8], strides = [1, 1]} : vector<8x32xf32> to vector<8x8xf32>
    %10 = vector.shape_cast %6 : vector<8x8xf32> to vector<1x8x8xf32>
    %11 = vector.shape_cast %7 : vector<8x8xf32> to vector<1x8x8xf32>
    %12 = vector.shape_cast %8 : vector<8x8xf32> to vector<1x8x8xf32>
    %13 = vector.shape_cast %9 : vector<8x8xf32> to vector<1x8x8xf32>
    %14 = tpu.concatenate %10, %11, %12, %13 in 0 : vector<1x8x8xf32>, vector<1x8x8xf32>, vector<1x8x8xf32>, vector<1x8x8xf32> -> vector<4x8x8xf32>
    %c0_9 = arith.constant 0 : index
    %c0_10 = arith.constant 0 : index
    %15 = vector.load %arg2[%c0_9, %c0_10] : memref<32x96xbf16, #tpu.memory_space<vmem>>, vector<32x96xbf16>
    %16 = arith.truncf %0 : vector<16x32xf32> to vector<16x32xbf16>
    %cst_11 = arith.constant dense<0.000000e+00> : vector<16x96xf32>
    %17 = tpu.matmul %16, %15, %cst_11 {dimension_numbers = #tpu.dot_dimension_numbers<[1], [0], [0], [1], [0, 0, 1, 1], [], []>} : vector<16x32xbf16>, vector<32x96xbf16>, vector<16x96xf32> -> vector<16x96xf32>
    %18 = vector.extract_strided_slice %17 {offsets = [0, 0], sizes = [16, 32], strides = [1, 1]} : vector<16x96xf32> to vector<16x32xf32>
    %cst_12 = arith.constant 0.353553385 : f32
    %19 = vector.broadcast %cst_12 : f32 to vector<16x32xf32>
    %20 = arith.mulf %18, %19 : vector<16x32xf32>
    %21 = vector.extract_strided_slice %17 {offsets = [0, 32], sizes = [16, 32], strides = [1, 1]} : vector<16x96xf32> to vector<16x32xf32>
    %22 = vector.extract_strided_slice %17 {offsets = [0, 64], sizes = [16, 32], strides = [1, 1]} : vector<16x96xf32> to vector<16x32xf32>
    %23 = vector.extract_strided_slice %20 {offsets = [0, 0], sizes = [16, 8], strides = [1, 1]} : vector<16x32xf32> to vector<16x8xf32>
    %24 = vector.extract_strided_slice %20 {offsets = [0, 8], sizes = [16, 8], strides = [1, 1]} : vector<16x32xf32> to vector<16x8xf32>
    %25 = vector.extract_strided_slice %20 {offsets = [0, 16], sizes = [16, 8], strides = [1, 1]} : vector<16x32xf32> to vector<16x8xf32>
    %26 = vector.extract_strided_slice %20 {offsets = [0, 24], sizes = [16, 8], strides = [1, 1]} : vector<16x32xf32> to vector<16x8xf32>
    %27 = vector.shape_cast %23 : vector<16x8xf32> to vector<1x16x8xf32>
    %28 = vector.shape_cast %24 : vector<16x8xf32> to vector<1x16x8xf32>
    %29 = vector.shape_cast %25 : vector<16x8xf32> to vector<1x16x8xf32>
    %30 = vector.shape_cast %26 : vector<16x8xf32> to vector<1x16x8xf32>
    %31 = tpu.concatenate %27, %28, %29, %30 in 0 : vector<1x16x8xf32>, vector<1x16x8xf32>, vector<1x16x8xf32>, vector<1x16x8xf32> -> vector<4x16x8xf32>
    %32 = vector.extract_strided_slice %21 {offsets = [0, 0], sizes = [16, 8], strides = [1, 1]} : vector<16x32xf32> to vector<16x8xf32>
    %33 = vector.extract_strided_slice %21 {offsets = [0, 8], sizes = [16, 8], strides = [1, 1]} : vector<16x32xf32> to vector<16x8xf32>
    %34 = vector.extract_strided_slice %21 {offsets = [0, 16], sizes = [16, 8], strides = [1, 1]} : vector<16x32xf32> to vector<16x8xf32>
    %35 = vector.extract_strided_slice %21 {offsets = [0, 24], sizes = [16, 8], strides = [1, 1]} : vector<16x32xf32> to vector<16x8xf32>
    %36 = vector.shape_cast %32 : vector<16x8xf32> to vector<1x16x8xf32>
    %37 = vector.shape_cast %33 : vector<16x8xf32> to vector<1x16x8xf32>
    %38 = vector.shape_cast %34 : vector<16x8xf32> to vector<1x16x8xf32>
    %39 = vector.shape_cast %35 : vector<16x8xf32> to vector<1x16x8xf32>
    %40 = tpu.concatenate %36, %37, %38, %39 in 0 : vector<1x16x8xf32>, vector<1x16x8xf32>, vector<1x16x8xf32>, vector<1x16x8xf32> -> vector<4x16x8xf32>
    %41 = vector.extract_strided_slice %22 {offsets = [0, 0], sizes = [16, 8], strides = [1, 1]} : vector<16x32xf32> to vector<16x8xf32>
    %42 = vector.extract_strided_slice %22 {offsets = [0, 8], sizes = [16, 8], strides = [1, 1]} : vector<16x32xf32> to vector<16x8xf32>
    %43 = vector.extract_strided_slice %22 {offsets = [0, 16], sizes = [16, 8], strides = [1, 1]} : vector<16x32xf32> to vector<16x8xf32>
    %44 = vector.extract_strided_slice %22 {offsets = [0, 24], sizes = [16, 8], strides = [1, 1]} : vector<16x32xf32> to vector<16x8xf32>
    %45 = vector.shape_cast %41 : vector<16x8xf32> to vector<1x16x8xf32>
    %46 = vector.shape_cast %42 : vector<16x8xf32> to vector<1x16x8xf32>
    %47 = vector.shape_cast %43 : vector<16x8xf32> to vector<1x16x8xf32>
    %48 = vector.shape_cast %44 : vector<16x8xf32> to vector<1x16x8xf32>
    %49 = tpu.concatenate %45, %46, %47, %48 in 0 : vector<1x16x8xf32>, vector<1x16x8xf32>, vector<1x16x8xf32>, vector<1x16x8xf32> -> vector<4x16x8xf32>
    %50 = arith.truncf %31 : vector<4x16x8xf32> to vector<4x16x8xbf16>
    %51 = arith.truncf %40 : vector<4x16x8xf32> to vector<4x16x8xbf16>
    "tpu.trace_start"() <{level = 10 : i32, message = "hnd,hmd->hnm"}> : () -> ()
    %cst_13 = arith.constant dense<0.000000e+00> : vector<4x16x16xf32>
    %52 = tpu.matmul %50, %51, %cst_13 {dimension_numbers = #tpu.dot_dimension_numbers<[2], [2], [1], [1], [0, 0, 0, 1, 1, 1], [0], [0]>} : vector<4x16x8xbf16>, vector<4x16x8xbf16>, vector<4x16x16xf32> -> vector<4x16x16xf32>
    "tpu.trace_stop"() : () -> ()
    %53 = arith.truncf %31 : vector<4x16x8xf32> to vector<4x16x8xbf16>
    %54 = arith.truncf %14 : vector<4x8x8xf32> to vector<4x8x8xbf16>
    "tpu.trace_start"() <{level = 10 : i32, message = "hnd,hrd->hnr"}> : () -> ()
    %cst_14 = arith.constant dense<0.000000e+00> : vector<4x16x8xf32>
    %55 = tpu.matmul %53, %54, %cst_14 {dimension_numbers = #tpu.dot_dimension_numbers<[2], [2], [1], [1], [0, 0, 0, 1, 1, 1], [0], [0]>} : vector<4x16x8xbf16>, vector<4x8x8xbf16>, vector<4x16x8xf32> -> vector<4x16x8xf32>
    %cst_15 = arith.constant 0.000000e+00 : f32
    "tpu.trace_stop"() : () -> ()
    %56 = vector.broadcast %cst_15 : f32 to vector<4x16x16xf32>
    %c0_i32 = arith.constant 0 : i32
    %57 = vector.broadcast %c0_i32 : i32 to vector<16x16xi32>
    %58 = arith.cmpi eq, %2, %57 : vector<16x16xi32>
    %59 = vector.extract_strided_slice %55 {offsets = [0, 0, 0], sizes = [4, 16, 1], strides = [1, 1, 1]} : vector<4x16x8xf32> to vector<4x16x1xf32>
    %cst_16 = arith.constant 0.000000e+00 : f32
    %60 = vector.shape_cast %58 : vector<16x16xi1> to vector<1x16x16xi1>
    %61 = vector.broadcast %60 : vector<1x16x16xi1> to vector<4x16x16xi1>
    %62 = vector.shape_cast %59 : vector<4x16x1xf32> to vector<4x16x1xf32>
    %63 = vector.broadcast %62 : vector<4x16x1xf32> to vector<4x16x16xf32>
    %64 = vector.broadcast %cst_16 : f32 to vector<4x16x16xf32>
    %65 = arith.select %61, %63, %64 : vector<4x16x16xi1>, vector<4x16x16xf32>
    %66 = arith.addf %56, %65 : vector<4x16x16xf32>
    %c1_i32 = arith.constant 1 : i32
    %67 = vector.broadcast %c1_i32 : i32 to vector<16x16xi32>
    %68 = arith.cmpi eq, %2, %67 : vector<16x16xi32>
    %69 = vector.extract_strided_slice %55 {offsets = [0, 0, 1], sizes = [4, 16, 1], strides = [1, 1, 1]} : vector<4x16x8xf32> to vector<4x16x1xf32>
    %cst_17 = arith.constant 0.000000e+00 : f32
    %70 = vector.shape_cast %68 : vector<16x16xi1> to vector<1x16x16xi1>
    %71 = vector.broadcast %70 : vector<1x16x16xi1> to vector<4x16x16xi1>
    %72 = vector.shape_cast %69 : vector<4x16x1xf32> to vector<4x16x1xf32>
    %73 = vector.broadcast %72 : vector<4x16x1xf32> to vector<4x16x16xf32>
    %74 = vector.broadcast %cst_17 : f32 to vector<4x16x16xf32>
    %75 = arith.select %71, %73, %74 : vector<4x16x16xi1>, vector<4x16x16xf32>
    %76 = arith.addf %66, %75 : vector<4x16x16xf32>
    %c2_i32 = arith.constant 2 : i32
    %77 = vector.broadcast %c2_i32 : i32 to vector<16x16xi32>
    %78 = arith.cmpi eq, %2, %77 : vector<16x16xi32>
    %79 = vector.extract_strided_slice %55 {offsets = [0, 0, 2], sizes = [4, 16, 1], strides = [1, 1, 1]} : vector<4x16x8xf32> to vector<4x16x1xf32>
    %cst_18 = arith.constant 0.000000e+00 : f32
    %80 = vector.shape_cast %78 : vector<16x16xi1> to vector<1x16x16xi1>
    %81 = vector.broadcast %80 : vector<1x16x16xi1> to vector<4x16x16xi1>
    %82 = vector.shape_cast %79 : vector<4x16x1xf32> to vector<4x16x1xf32>
    %83 = vector.broadcast %82 : vector<4x16x1xf32> to vector<4x16x16xf32>
    %84 = vector.broadcast %cst_18 : f32 to vector<4x16x16xf32>
    %85 = arith.select %81, %83, %84 : vector<4x16x16xi1>, vector<4x16x16xf32>
    %86 = arith.addf %76, %85 : vector<4x16x16xf32>
    %c3_i32 = arith.constant 3 : i32
    %87 = vector.broadcast %c3_i32 : i32 to vector<16x16xi32>
    %88 = arith.cmpi eq, %2, %87 : vector<16x16xi32>
    %89 = vector.extract_strided_slice %55 {offsets = [0, 0, 3], sizes = [4, 16, 1], strides = [1, 1, 1]} : vector<4x16x8xf32> to vector<4x16x1xf32>
    %cst_19 = arith.constant 0.000000e+00 : f32
    %90 = vector.shape_cast %88 : vector<16x16xi1> to vector<1x16x16xi1>
    %91 = vector.broadcast %90 : vector<1x16x16xi1> to vector<4x16x16xi1>
    %92 = vector.shape_cast %89 : vector<4x16x1xf32> to vector<4x16x1xf32>
    %93 = vector.broadcast %92 : vector<4x16x1xf32> to vector<4x16x16xf32>
    %94 = vector.broadcast %cst_19 : f32 to vector<4x16x16xf32>
    %95 = arith.select %91, %93, %94 : vector<4x16x16xi1>, vector<4x16x16xf32>
    %96 = arith.addf %86, %95 : vector<4x16x16xf32>
    %c4_i32 = arith.constant 4 : i32
    %97 = vector.broadcast %c4_i32 : i32 to vector<16x16xi32>
    %98 = arith.cmpi eq, %2, %97 : vector<16x16xi32>
    %99 = vector.extract_strided_slice %55 {offsets = [0, 0, 4], sizes = [4, 16, 1], strides = [1, 1, 1]} : vector<4x16x8xf32> to vector<4x16x1xf32>
    %cst_20 = arith.constant 0.000000e+00 : f32
    %100 = vector.shape_cast %98 : vector<16x16xi1> to vector<1x16x16xi1>
    %101 = vector.broadcast %100 : vector<1x16x16xi1> to vector<4x16x16xi1>
    %102 = vector.shape_cast %99 : vector<4x16x1xf32> to vector<4x16x1xf32>
    %103 = vector.broadcast %102 : vector<4x16x1xf32> to vector<4x16x16xf32>
    %104 = vector.broadcast %cst_20 : f32 to vector<4x16x16xf32>
    %105 = arith.select %101, %103, %104 : vector<4x16x16xi1>, vector<4x16x16xf32>
    %106 = arith.addf %96, %105 : vector<4x16x16xf32>
    %c5_i32 = arith.constant 5 : i32
    %107 = vector.broadcast %c5_i32 : i32 to vector<16x16xi32>
    %108 = arith.cmpi eq, %2, %107 : vector<16x16xi32>
    %109 = vector.extract_strided_slice %55 {offsets = [0, 0, 5], sizes = [4, 16, 1], strides = [1, 1, 1]} : vector<4x16x8xf32> to vector<4x16x1xf32>
    %cst_21 = arith.constant 0.000000e+00 : f32
    %110 = vector.shape_cast %108 : vector<16x16xi1> to vector<1x16x16xi1>
    %111 = vector.broadcast %110 : vector<1x16x16xi1> to vector<4x16x16xi1>
    %112 = vector.shape_cast %109 : vector<4x16x1xf32> to vector<4x16x1xf32>
    %113 = vector.broadcast %112 : vector<4x16x1xf32> to vector<4x16x16xf32>
    %114 = vector.broadcast %cst_21 : f32 to vector<4x16x16xf32>
    %115 = arith.select %111, %113, %114 : vector<4x16x16xi1>, vector<4x16x16xf32>
    %116 = arith.addf %106, %115 : vector<4x16x16xf32>
    %c6_i32 = arith.constant 6 : i32
    %117 = vector.broadcast %c6_i32 : i32 to vector<16x16xi32>
    %118 = arith.cmpi eq, %2, %117 : vector<16x16xi32>
    %119 = vector.extract_strided_slice %55 {offsets = [0, 0, 6], sizes = [4, 16, 1], strides = [1, 1, 1]} : vector<4x16x8xf32> to vector<4x16x1xf32>
    %cst_22 = arith.constant 0.000000e+00 : f32
    %120 = vector.shape_cast %118 : vector<16x16xi1> to vector<1x16x16xi1>
    %121 = vector.broadcast %120 : vector<1x16x16xi1> to vector<4x16x16xi1>
    %122 = vector.shape_cast %119 : vector<4x16x1xf32> to vector<4x16x1xf32>
    %123 = vector.broadcast %122 : vector<4x16x1xf32> to vector<4x16x16xf32>
    %124 = vector.broadcast %cst_22 : f32 to vector<4x16x16xf32>
    %125 = arith.select %121, %123, %124 : vector<4x16x16xi1>, vector<4x16x16xf32>
    %126 = arith.addf %116, %125 : vector<4x16x16xf32>
    %c7_i32 = arith.constant 7 : i32
    %127 = vector.broadcast %c7_i32 : i32 to vector<16x16xi32>
    %128 = arith.cmpi eq, %2, %127 : vector<16x16xi32>
    %129 = vector.extract_strided_slice %55 {offsets = [0, 0, 7], sizes = [4, 16, 1], strides = [1, 1, 1]} : vector<4x16x8xf32> to vector<4x16x1xf32>
    %cst_23 = arith.constant 0.000000e+00 : f32
    %130 = vector.shape_cast %128 : vector<16x16xi1> to vector<1x16x16xi1>
    %131 = vector.broadcast %130 : vector<1x16x16xi1> to vector<4x16x16xi1>
    %132 = vector.shape_cast %129 : vector<4x16x1xf32> to vector<4x16x1xf32>
    %133 = vector.broadcast %132 : vector<4x16x1xf32> to vector<4x16x16xf32>
    %134 = vector.broadcast %cst_23 : f32 to vector<4x16x16xf32>
    %135 = arith.select %131, %133, %134 : vector<4x16x16xi1>, vector<4x16x16xf32>
    %136 = arith.addf %126, %135 : vector<4x16x16xf32>
    %137 = arith.addf %52, %136 : vector<4x16x16xf32>
    %cst_24 = arith.constant 0.000000e+00 : bf16
    %138 = vector.broadcast %cst_24 : bf16 to vector<16x16xbf16>
    %139 = arith.cmpf ogt, %1, %138 : vector<16x16xbf16>
    %140 = vector.shape_cast %139 : vector<16x16xi1> to vector<1x16x16xi1>
    %cst_25 = arith.constant -1.000000e+30 : f32
    %141 = vector.shape_cast %140 : vector<1x16x16xi1> to vector<1x16x16xi1>
    %142 = vector.broadcast %141 : vector<1x16x16xi1> to vector<4x16x16xi1>
    %143 = vector.broadcast %cst_25 : f32 to vector<4x16x16xf32>
    %144 = arith.select %142, %137, %143 : vector<4x16x16xi1>, vector<4x16x16xf32>
    %cst_26 = arith.constant dense<0xFF800000> : vector<4x16xf32>
    %145 = vector.multi_reduction <maximumf>, %144, %cst_26 [2] : vector<4x16x16xf32> to vector<4x16xf32>
    %146 = vector.shape_cast %145 : vector<4x16xf32> to vector<4x16x1xf32>
    %147 = vector.broadcast %146 : vector<4x16x1xf32> to vector<4x16x16xf32>
    %148 = arith.subf %144, %147 : vector<4x16x16xf32>
    %149 = math.exp %148 : vector<4x16x16xf32>
    %cst_27 = arith.constant dense<0.000000e+00> : vector<4x16xf32>
    %150 = vector.multi_reduction <add>, %149, %cst_27 [2] : vector<4x16x16xf32> to vector<4x16xf32>
    %151 = vector.shape_cast %150 : vector<4x16xf32> to vector<4x16x1xf32>
    %cst_28 = arith.constant 1.000000e-30 : f32
    %152 = vector.broadcast %cst_28 : f32 to vector<4x16x1xf32>
    %153 = arith.maximumf %151, %152 : vector<4x16x1xf32>
    %154 = tpu.reciprocal %153 {approx = true} : vector<4x16x1xf32> -> vector<4x16x1xf32>
    %155 = vector.broadcast %154 : vector<4x16x1xf32> to vector<4x16x16xf32>
    %156 = arith.mulf %149, %155 : vector<4x16x16xf32>
    %cst_29 = arith.constant -1.000000e+29 : f32
    %157 = vector.broadcast %cst_29 : f32 to vector<4x16x1xf32>
    %158 = arith.cmpf ogt, %146, %157 : vector<4x16x1xf32>
    %cst_30 = arith.constant 0.000000e+00 : f32
    %159 = vector.shape_cast %158 : vector<4x16x1xi1> to vector<4x16x1xi1>
    %160 = vector.broadcast %159 : vector<4x16x1xi1> to vector<4x16x16xi1>
    %161 = vector.broadcast %cst_30 : f32 to vector<4x16x16xf32>
    %162 = arith.select %160, %156, %161 : vector<4x16x16xi1>, vector<4x16x16xf32>
    %cst_31 = arith.constant 8.500000e-01 : f32
    %163 = vector.broadcast %cst_31 : f32 to vector<4x16x16xf32>
    %164 = arith.mulf %163, %162 : vector<4x16x16xf32>
    %165 = arith.truncf %164 : vector<4x16x16xf32> to vector<4x16x16xbf16>
    %cst_32 = arith.constant 1.500000e-01 : f32
    %166 = vector.broadcast %cst_32 : f32 to vector<4x16x8xf32>
    %167 = arith.mulf %166, %49 : vector<4x16x8xf32>
    %168 = arith.truncf %49 : vector<4x16x8xf32> to vector<4x16x8xbf16>
    "tpu.trace_start"() <{level = 10 : i32, message = "hnm,hmd->hnd"}> : () -> ()
    %cst_33 = arith.constant dense<0.000000e+00> : vector<4x16x8xf32>
    %169 = tpu.matmul %165, %168, %cst_33 {dimension_numbers = #tpu.dot_dimension_numbers<[2], [1], [1], [2], [0, 0, 0, 1, 1, 2], [0], [0]>} : vector<4x16x16xbf16>, vector<4x16x8xbf16>, vector<4x16x8xf32> -> vector<4x16x8xf32>
    "tpu.trace_stop"() : () -> ()
    %170 = arith.addf %169, %167 : vector<4x16x8xf32>
    %171 = arith.truncf %170 : vector<4x16x8xf32> to vector<4x16x8xbf16>
    "tpu.trace_start"() <{level = 10 : i32, message = "hnm,hmd->hnd"}> : () -> ()
    %cst_34 = arith.constant dense<0.000000e+00> : vector<4x16x8xf32>
    %172 = tpu.matmul %165, %171, %cst_34 {dimension_numbers = #tpu.dot_dimension_numbers<[2], [1], [1], [2], [0, 0, 0, 1, 1, 2], [0], [0]>} : vector<4x16x16xbf16>, vector<4x16x8xbf16>, vector<4x16x8xf32> -> vector<4x16x8xf32>
    "tpu.trace_stop"() : () -> ()
    %173 = arith.addf %172, %167 : vector<4x16x8xf32>
    %174 = arith.truncf %173 : vector<4x16x8xf32> to vector<4x16x8xbf16>
    "tpu.trace_start"() <{level = 10 : i32, message = "hnm,hmd->hnd"}> : () -> ()
    %cst_35 = arith.constant dense<0.000000e+00> : vector<4x16x8xf32>
    %175 = tpu.matmul %165, %174, %cst_35 {dimension_numbers = #tpu.dot_dimension_numbers<[2], [1], [1], [2], [0, 0, 0, 1, 1, 2], [0], [0]>} : vector<4x16x16xbf16>, vector<4x16x8xbf16>, vector<4x16x8xf32> -> vector<4x16x8xf32>
    "tpu.trace_stop"() : () -> ()
    %176 = arith.addf %175, %167 : vector<4x16x8xf32>
    %177 = vector.extract_strided_slice %176 {offsets = [0, 0, 0], sizes = [1, 16, 8], strides = [1, 1, 1]} : vector<4x16x8xf32> to vector<1x16x8xf32>
    %178 = vector.shape_cast %177 : vector<1x16x8xf32> to vector<16x8xf32>
    %179 = vector.extract_strided_slice %176 {offsets = [1, 0, 0], sizes = [1, 16, 8], strides = [1, 1, 1]} : vector<4x16x8xf32> to vector<1x16x8xf32>
    %180 = vector.shape_cast %179 : vector<1x16x8xf32> to vector<16x8xf32>
    %181 = vector.extract_strided_slice %176 {offsets = [2, 0, 0], sizes = [1, 16, 8], strides = [1, 1, 1]} : vector<4x16x8xf32> to vector<1x16x8xf32>
    %182 = vector.shape_cast %181 : vector<1x16x8xf32> to vector<16x8xf32>
    %183 = vector.extract_strided_slice %176 {offsets = [3, 0, 0], sizes = [1, 16, 8], strides = [1, 1, 1]} : vector<4x16x8xf32> to vector<1x16x8xf32>
    %184 = vector.shape_cast %183 : vector<1x16x8xf32> to vector<16x8xf32>
    %185 = tpu.concatenate %178, %180, %182, %184 in 1 : vector<16x8xf32>, vector<16x8xf32>, vector<16x8xf32>, vector<16x8xf32> -> vector<16x32xf32>
    %c0_36 = arith.constant 0 : index
    %c0_37 = arith.constant 0 : index
    %186 = vector.load %arg6[%c0_36, %c0_37] : memref<1x32xf32, #tpu.memory_space<vmem>>, vector<1x32xf32>
    %c0_38 = arith.constant 0 : index
    %c0_39 = arith.constant 0 : index
    %187 = vector.load %arg7[%c0_38, %c0_39] : memref<1x32xf32, #tpu.memory_space<vmem>>, vector<1x32xf32>
    %c0_40 = arith.constant 0 : index
    %c0_41 = arith.constant 0 : index
    %188 = vector.load %arg8[%c0_40, %c0_41] : memref<32x128xbf16, #tpu.memory_space<vmem>>, vector<32x128xbf16>
    %c0_42 = arith.constant 0 : index
    %c0_43 = arith.constant 0 : index
    %189 = vector.load %arg9[%c0_42, %c0_43] : memref<1x128xf32, #tpu.memory_space<vmem>>, vector<1x128xf32>
    %c0_44 = arith.constant 0 : index
    %c0_45 = arith.constant 0 : index
    %190 = vector.load %arg10[%c0_44, %c0_45] : memref<128x32xbf16, #tpu.memory_space<vmem>>, vector<128x32xbf16>
    %c0_46 = arith.constant 0 : index
    %c0_47 = arith.constant 0 : index
    %191 = vector.load %arg11[%c0_46, %c0_47] : memref<1x32xf32, #tpu.memory_space<vmem>>, vector<1x32xf32>
    %c0_48 = arith.constant 0 : index
    %c0_49 = arith.constant 0 : index
    %192 = vector.load %arg12[%c0_48, %c0_49] : memref<1x32xf32, #tpu.memory_space<vmem>>, vector<1x32xf32>
    %c0_50 = arith.constant 0 : index
    %c0_51 = arith.constant 0 : index
    %193 = vector.load %arg13[%c0_50, %c0_51] : memref<1x32xf32, #tpu.memory_space<vmem>>, vector<1x32xf32>
    %194 = arith.addf %185, %0 : vector<16x32xf32>
    %cst_52 = arith.constant dense<0.000000e+00> : vector<16xf32>
    %195 = vector.multi_reduction <add>, %194, %cst_52 [1] : vector<16x32xf32> to vector<16xf32>
    %196 = vector.shape_cast %195 : vector<16xf32> to vector<16x1xf32>
    %cst_53 = arith.constant 3.200000e+01 : f32
    %197 = vector.broadcast %cst_53 : f32 to vector<16x1xf32>
    %198 = arith.divf %196, %197 : vector<16x1xf32>
    %199 = vector.broadcast %198 : vector<16x1xf32> to vector<16x32xf32>
    %200 = arith.subf %194, %199 : vector<16x32xf32>
    %201 = arith.mulf %200, %200 : vector<16x32xf32>
    %cst_54 = arith.constant dense<0.000000e+00> : vector<16xf32>
    %202 = vector.multi_reduction <add>, %201, %cst_54 [1] : vector<16x32xf32> to vector<16xf32>
    %203 = vector.shape_cast %202 : vector<16xf32> to vector<16x1xf32>
    %cst_55 = arith.constant 3.200000e+01 : f32
    %204 = vector.broadcast %cst_55 : f32 to vector<16x1xf32>
    %205 = arith.divf %203, %204 : vector<16x1xf32>
    %206 = vector.broadcast %198 : vector<16x1xf32> to vector<16x32xf32>
    %207 = arith.subf %194, %206 : vector<16x32xf32>
    %cst_56 = arith.constant 9.99999974E-6 : f32
    %208 = vector.broadcast %cst_56 : f32 to vector<16x1xf32>
    %209 = arith.addf %205, %208 : vector<16x1xf32>
    %210 = math.rsqrt %209 : vector<16x1xf32>
    %211 = vector.broadcast %210 : vector<16x1xf32> to vector<16x32xf32>
    %212 = arith.mulf %207, %211 : vector<16x32xf32>
    %213 = vector.broadcast %186 : vector<1x32xf32> to vector<16x32xf32>
    %214 = arith.mulf %212, %213 : vector<16x32xf32>
    %215 = vector.broadcast %187 : vector<1x32xf32> to vector<16x32xf32>
    %216 = arith.addf %214, %215 : vector<16x32xf32>
    %217 = arith.truncf %216 : vector<16x32xf32> to vector<16x32xbf16>
    %cst_57 = arith.constant dense<0.000000e+00> : vector<16x128xf32>
    %218 = tpu.matmul %217, %188, %cst_57 {dimension_numbers = #tpu.dot_dimension_numbers<[1], [0], [0], [1], [0, 0, 1, 1], [], []>} : vector<16x32xbf16>, vector<32x128xbf16>, vector<16x128xf32> -> vector<16x128xf32>
    %219 = vector.broadcast %189 : vector<1x128xf32> to vector<16x128xf32>
    %220 = arith.addf %218, %219 : vector<16x128xf32>
    %cst_58 = arith.constant 0.000000e+00 : f32
    %221 = vector.broadcast %cst_58 : f32 to vector<16x128xf32>
    %222 = arith.maximumf %220, %221 : vector<16x128xf32>
    %223 = arith.truncf %222 : vector<16x128xf32> to vector<16x128xbf16>
    %cst_59 = arith.constant dense<0.000000e+00> : vector<16x32xf32>
    %224 = tpu.matmul %223, %190, %cst_59 {dimension_numbers = #tpu.dot_dimension_numbers<[1], [0], [0], [1], [0, 0, 1, 1], [], []>} : vector<16x128xbf16>, vector<128x32xbf16>, vector<16x32xf32> -> vector<16x32xf32>
    %225 = vector.broadcast %191 : vector<1x32xf32> to vector<16x32xf32>
    %226 = arith.addf %224, %225 : vector<16x32xf32>
    %227 = arith.addf %216, %226 : vector<16x32xf32>
    %cst_60 = arith.constant dense<0.000000e+00> : vector<16xf32>
    %228 = vector.multi_reduction <add>, %227, %cst_60 [1] : vector<16x32xf32> to vector<16xf32>
    %229 = vector.shape_cast %228 : vector<16xf32> to vector<16x1xf32>
    %cst_61 = arith.constant 3.200000e+01 : f32
    %230 = vector.broadcast %cst_61 : f32 to vector<16x1xf32>
    %231 = arith.divf %229, %230 : vector<16x1xf32>
    %232 = vector.broadcast %231 : vector<16x1xf32> to vector<16x32xf32>
    %233 = arith.subf %227, %232 : vector<16x32xf32>
    %234 = arith.mulf %233, %233 : vector<16x32xf32>
    %cst_62 = arith.constant dense<0.000000e+00> : vector<16xf32>
    %235 = vector.multi_reduction <add>, %234, %cst_62 [1] : vector<16x32xf32> to vector<16xf32>
    %236 = vector.shape_cast %235 : vector<16xf32> to vector<16x1xf32>
    %cst_63 = arith.constant 3.200000e+01 : f32
    %237 = vector.broadcast %cst_63 : f32 to vector<16x1xf32>
    %238 = arith.divf %236, %237 : vector<16x1xf32>
    %239 = vector.broadcast %231 : vector<16x1xf32> to vector<16x32xf32>
    %240 = arith.subf %227, %239 : vector<16x32xf32>
    %cst_64 = arith.constant 9.99999974E-6 : f32
    %241 = vector.broadcast %cst_64 : f32 to vector<16x1xf32>
    %242 = arith.addf %238, %241 : vector<16x1xf32>
    %243 = math.rsqrt %242 : vector<16x1xf32>
    %244 = vector.broadcast %243 : vector<16x1xf32> to vector<16x32xf32>
    %245 = arith.mulf %240, %244 : vector<16x32xf32>
    %246 = vector.broadcast %192 : vector<1x32xf32> to vector<16x32xf32>
    %247 = arith.mulf %245, %246 : vector<16x32xf32>
    %248 = vector.broadcast %193 : vector<1x32xf32> to vector<16x32xf32>
    %249 = arith.addf %247, %248 : vector<16x32xf32>
    %c0_65 = arith.constant 0 : index
    %c0_66 = arith.constant 0 : index
    %250 = vector.load %arg14[%c0_65, %c0_66] : memref<16x32xf32, #tpu.memory_space<vmem>>, vector<16x32xf32>
    tpu.vector_store %arg14[%c0_65, %c0_66], %249 {strides = array<i32>} : memref<16x32xf32, #tpu.memory_space<vmem>>, vector<16x32xf32>,
    return
  }
}

</mosaic_0001>

<llo_original>
// kernel: tpu_custom_call.1
$region0: #{tpu_custom_call.1}
  #allocation0 [shape = 'u32[]', space=smem, size = 0x4, offset = 0x4, fixed_abs, tag = 'smem constant byte address 0x4 - core index']
  #allocation1 [shape = 'u32[72,128]{1,0:T(1,128)}', space=vmem, size = 0x9000, scoped, tag = 'internal scratch']
  %s0 = inlined_call_operand.vmem [shape: f32[16,32], index: 0, kind: input, shape index: {}]
  %s1 = inlined_call_operand.hbm [shape: bf16[8,32], index: 1, kind: input, shape index: {}]
  %s2 = inlined_call_operand.vmem [shape: bf16[32,96], index: 2, kind: input, shape index: {}]
  %s3 = inlined_call_operand.vmem [shape: bf16[32,32], index: 3, kind: input, shape index: {}]
  %s4 = inlined_call_operand.hbm [shape: bf16[16,16], index: 4, kind: input, shape index: {}]
  %s5 = inlined_call_operand.vmem [shape: s32[16,16], index: 5, kind: input, shape index: {}]
  %s6 = inlined_call_operand.vmem [shape: f32[1,32], index: 6, kind: input, shape index: {}]
  %s7 = inlined_call_operand.vmem [shape: f32[1,32], index: 7, kind: input, shape index: {}]
  %s8 = inlined_call_operand.vmem [shape: bf16[32,128], index: 8, kind: input, shape index: {}]
  %s9 = inlined_call_operand.vmem [shape: f32[1,128], index: 9, kind: input, shape index: {}]
  %s10 = inlined_call_operand.vmem [shape: bf16[128,32], index: 10, kind: input, shape index: {}]
  %s11 = inlined_call_operand.vmem [shape: f32[1,32], index: 11, kind: input, shape index: {}]
  %s12 = inlined_call_operand.vmem [shape: f32[1,32], index: 12, kind: input, shape index: {}]
  %s13 = inlined_call_operand.vmem [shape: f32[1,32], index: 13, kind: input, shape index: {}]
  %s14 = inlined_call_operand.hbm [shape: f32[16,32], index: 14, kind: output, shape index: {}]
  %s15 = sld [smem:[#allocation0]]
  $region74: #{tpu_custom_call.1} parent=0
    _
  %s17 = ssub.s32 1, %s15
  %s18 = scalar_select 0, %s17, %s15
  $region1: #{tpu_custom_call.1} parent=0
    #allocation2 [shape = 'u8[2048]{0}', space=vmem, size = 0x800, scoped, tag = 'input window, operand 1, single buffered']
    #allocation3 [shape = 's32[1]{0}', space=sflag, size = 0x4, scoped, tag = 'scoped memory for tpu_custom_call.1']
    #allocation4 [shape = 's32[1]{0}', space=sflag, size = 0x4, scoped, tag = 'scoped memory for tpu_custom_call.1']
    #allocation5 [shape = 'u8[4096]{0}', space=vmem, size = 0x1000, scoped, tag = 'input window, operand 4, single buffered']
    #allocation6 [shape = 's32[1]{0}', space=sflag, size = 0x4, scoped, tag = 'scoped memory for tpu_custom_call.1']
    #allocation7 [shape = 'u8[8192]{0}', space=vmem, size = 0x2000, scoped, tag = 'output window, operand 0, single buffered']
    %19 = vsyncpa [#allocation3], 0
    %20 = vsyncpa [#allocation6], 0
    %21 = vsyncpa [#allocation4], 0
    // Predicated region
    $region2: #{tpu_custom_call.1} parent=1 // pred_check
      _
    $region3: #{tpu_custom_call.1} parent=1 // pred_check_branch
      %23 = sbr.rel (0) target = $region5
    $region4: #{tpu_custom_call.1} parent=1 // pred_region
      _
    $region5: #{tpu_custom_call.1} parent=1 // pred_fallthru
      _
    // Predicated region
    $region6: #{tpu_custom_call.1} parent=1 // pred_check
      _
    $region7: #{tpu_custom_call.1} parent=1 // pred_check_branch
      %25 = sbr.rel (0) target = $region9
    $region8: #{tpu_custom_call.1} parent=1 // pred_region
      %27 = vsyncadd [#allocation3], 0
      %s29 = sshll.u32 %s1, 4
      %s30 = int_to_ptr.hbm [resolvable:$true] %s29
      %s31 = sshll.u32 [#allocation2], 4
      %s32 = int_to_ptr.vmem [resolvable:$true] %s31
      %34 = dma.hbm_to_vmem [thread:$0]  %s30, 64, %s32, [#allocation3]
    $region9: #{tpu_custom_call.1} parent=1 // pred_fallthru
      _
    // Predicated region
    $region10: #{tpu_custom_call.1} parent=1 // pred_check
      _
    $region11: #{tpu_custom_call.1} parent=1 // pred_check_branch
      %36 = sbr.rel (0) target = $region13
    $region12: #{tpu_custom_call.1} parent=1 // pred_region
      _
    $region13: #{tpu_custom_call.1} parent=1 // pred_fallthru
      _
    // Predicated region
    $region14: #{tpu_custom_call.1} parent=1 // pred_check
      _
    $region15: #{tpu_custom_call.1} parent=1 // pred_check_branch
      %38 = sbr.rel (0) target = $region17
    $region16: #{tpu_custom_call.1} parent=1 // pred_region
      _
    $region17: #{tpu_custom_call.1} parent=1 // pred_fallthru
      _
    // Predicated region
    $region18: #{tpu_custom_call.1} parent=1 // pred_check
      _
    $region19: #{tpu_custom_call.1} parent=1 // pred_check_branch
      %40 = sbr.rel (0) target = $region21
    $region20: #{tpu_custom_call.1} parent=1 // pred_region
      %42 = vsyncadd [#allocation6], 0
      %s43 = sshll.u32 %s4, 4
      %s44 = int_to_ptr.hbm [resolvable:$true] %s43
      %s45 = sshll.u32 [#allocation5], 4
      %s46 = int_to_ptr.vmem [resolvable:$true] %s45
      %51 = dma.hbm_to_vmem [thread:$0]  %s44, 128, %s46, [#allocation6], 64, 64, 4
    $region21: #{tpu_custom_call.1} parent=1 // pred_fallthru
      _
    // Predicated region
    $region22: #{tpu_custom_call.1} parent=1 // pred_check
      _
    $region23: #{tpu_custom_call.1} parent=1 // pred_check_branch
      %53 = sbr.rel (0) target = $region25
    $region24: #{tpu_custom_call.1} parent=1 // pred_region
      _
    $region25: #{tpu_custom_call.1} parent=1 // pred_fallthru
      _
    // Predicated region
    $region26: #{tpu_custom_call.1} parent=1 // pred_check
      _
    $region27: #{tpu_custom_call.1} parent=1 // pred_check_branch
      %55 = sbr.rel (0) target = $region29
    $region28: #{tpu_custom_call.1} parent=1 // pred_region
      _
    $region29: #{tpu_custom_call.1} parent=1 // pred_fallthru
      _
    // Predicated region
    $region30: #{tpu_custom_call.1} parent=1 // pred_check
      _
    $region31: #{tpu_custom_call.1} parent=1 // pred_check_branch
      %57 = sbr.rel (0) target = $region33
    $region32: #{tpu_custom_call.1} parent=1 // pred_region
      _
    $region33: #{tpu_custom_call.1} parent=1 // pred_fallthru
      _
    // Predicated region
    $region34: #{tpu_custom_call.1} parent=1 // pred_check
      _
    $region35: #{tpu_custom_call.1} parent=1 // pred_check_branch
      %59 = sbr.rel (0) target = $region37
    $region36: #{tpu_custom_call.1} parent=1 // pred_region
      _
    $region37: #{tpu_custom_call.1} parent=1 // pred_fallthru
      _
    // Predicated region
    $region38: #{tpu_custom_call.1} parent=1 // pred_check
      _
    $region39: #{tpu_custom_call.1} parent=1 // pred_check_branch
      %61 = sbr.rel (0) target = $region41
    $region40: #{tpu_custom_call.1} parent=1 // pred_region
      _
    $region41: #{tpu_custom_call.1} parent=1 // pred_fallthru
      _
    // Predicated region
    $region42: #{tpu_custom_call.1} parent=1 // pred_check
      _
    $region43: #{tpu_custom_call.1} parent=1 // pred_check_branch
      %63 = sbr.rel (0) target = $region45
    $region44: #{tpu_custom_call.1} parent=1 // pred_region
      _
    $region45: #{tpu_custom_call.1} parent=1 // pred_fallthru
      _
    // Predicated region
    $region46: #{tpu_custom_call.1} parent=1 // pred_check
      _
    $region47: #{tpu_custom_call.1} parent=1 // pred_check_branch
      %65 = sbr.rel (0) target = $region49
    $region48: #{tpu_custom_call.1} parent=1 // pred_region
      _
    $region49: #{tpu_custom_call.1} parent=1 // pred_fallthru
      _
    // Predicated region
    $region50: #{tpu_custom_call.1} parent=1 // pred_check
      _
    $region51: #{tpu_custom_call.1} parent=1 // pred_check_branch
      %67 = sbr.rel (0) target = $region53
    $region52: #{tpu_custom_call.1} parent=1 // pred_region
      _
    $region53: #{tpu_custom_call.1} parent=1 // pred_fallthru
      _
    // Predicated region
    $region54: #{tpu_custom_call.1} parent=1 // pred_check
      _
    $region55: #{tpu_custom_call.1} parent=1 // pred_check_branch
      %69 = sbr.rel (0) target = $region57
    $region56: #{tpu_custom_call.1} parent=1 // pred_region
      _
    $region57: #{tpu_custom_call.1} parent=1 // pred_fallthru
      _
    // Predicated region
    $region58: #{tpu_custom_call.1} parent=1 // pred_check
      _
    $region59: #{tpu_custom_call.1} parent=1 // pred_check_branch
      %71 = sbr.rel (0) target = $region61
    $region60: #{tpu_custom_call.1} parent=1 // pred_region
      %73 = dma.done [#allocation3], 64
    $region61: #{tpu_custom_call.1} parent=1 // pred_fallthru
      _
    // Predicated region
    $region62: #{tpu_custom_call.1} parent=1 // pred_check
      _
    $region63: #{tpu_custom_call.1} parent=1 // pred_check_branch
      %75 = sbr.rel (0) target = $region65
    $region64: #{tpu_custom_call.1} parent=1 // pred_region
      %77 = dma.done [#allocation6], 128
    $region65: #{tpu_custom_call.1} parent=1 // pred_fallthru
      _
    %v79 = vld [vmem:[%s0] sm:$0xff]
    %v80 = vld [vmem:[%s0 + $0x8] sm:$0xff]
    %v81 = vld [vmem:[#allocation5] sm:$0xf]
    %v82 = vld [vmem:[#allocation5 + $0x4] sm:$0xf]
    %v83 = vld [vmem:[%s5] sm:$0xff]
    %v84 = vld [vmem:[%s5 + $0x8] sm:$0xff]
    %v85 = vld [vmem:[#allocation2] sm:$0xf]
    %v86 = vld [vmem:[%s3] sm:$0xf]
    %v87 = vld [vmem:[%s3 + $0x4] sm:$0xf]
    %v88 = vld [vmem:[%s3 + $0x8] sm:$0xf]
    %v89 = vld [vmem:[%s3 + $0xc] sm:$0xf]
    %v94 = vunpack.c.l.b16 %v86
    %v95 = vunpack.c.l.b16 %v87
    %v96 = vunpack.c.l.b16 %v88
    %v97 = vunpack.c.l.b16 %v89
    %v98 = vpack.c.b16 %v95, %v94
    %v99 = vpack.c.b16 %v97, %v96
    %vm102 = vcmask 261120
    %v104 = vsel %vm102, %v85, 0
    %106 = vmatpush.bf16.msra.mxu0 0
    %107 = vmatpush.bf16.msra.mxu0 0
    %108 = vmatpush.bf16.msra.mxu0 0
    %109 = vmatpush.bf16.msra.mxu0 0
    %110 = vmatpush.bf16.msra.mxu0 0
    %111 = vmatpush.bf16.msra.mxu0 0
    %112 = vmatpush.bf16.msra.mxu0 %v99
    %113 = vmatpush.bf16.msra.mxu0 %v98
    %114 = vmatmul.bf16.gmra.mxu0 %v104
    %v115 = vpop.f32.mrf.mxu0
    %v116 = vadd.f32 0.0, %v115
    %v117 = vpop.f32.mrf.mxu0
    %118 = vdwg.mxu0
    %120 = vrot.lane.b32.xlu0 %v116, 120
    %v121 = vpop.permute.xlu0 %120
    %123 = vrot.lane.b32.xlu0 %v116, 112
    %v124 = vpop.permute.xlu0 %123
    %126 = vrot.lane.b32.xlu0 %v116, 104
    %v127 = vpop.permute.xlu0 %126
    %v129 = vld [vmem:[%s2] sm:$0xf]
    %v130 = vld [vmem:[%s2 + $0x4] sm:$0xf]
    %v131 = vld [vmem:[%s2 + $0x8] sm:$0xf]
    %v132 = vld [vmem:[%s2 + $0xc] sm:$0xf]
    %v133 = vpack.c.bf16 %v80, %v79
    %v138 = vunpack.c.l.b16 %v129
    %v139 = vunpack.c.l.b16 %v130
    %v140 = vunpack.c.l.b16 %v131
    %v141 = vunpack.c.l.b16 %v132
    %v142 = vpack.c.b16 %v139, %v138
    %v143 = vpack.c.b16 %v141, %v140
    %v147 = vsel %vm102, %v133, 0
    %149 = vmatpush.bf16.msra.mxu0 0
    %150 = vmatpush.bf16.msra.mxu0 0
    %151 = vmatpush.bf16.msra.mxu0 0
    %152 = vmatpush.bf16.msra.mxu0 0
    %153 = vmatpush.bf16.msra.mxu0 0
    %154 = vmatpush.bf16.msra.mxu0 0
    %155 = vmatpush.bf16.msra.mxu0 %v143
    %156 = vmatpush.bf16.msra.mxu0 %v142
    %157 = vmatmul.bf16.gmra.mxu0 %v147
    %v158 = vpop.f32.mrf.mxu0
    %v159 = vadd.f32 0.0, %v158
    %v160 = vpop.f32.mrf.mxu0
    %v161 = vadd.f32 0.0, %v160
    %162 = vdwg.mxu0
    %v163 = vmul.f32 %v159, 0.35355338
    %v164 = vmul.f32 %v161, 0.35355338
    %167 = vrot.lane.b32.xlu0 %v163, 120
    %v168 = vpop.permute.xlu0 %167
    %169 = vrot.lane.b32.xlu0 %v164, 120
    %v170 = vpop.permute.xlu0 %169
    %173 = vrot.lane.b32.xlu0 %v163, 112
    %v174 = vpop.permute.xlu0 %173
    %175 = vrot.lane.b32.xlu0 %v164, 112
    %v176 = vpop.permute.xlu0 %175
    %179 = vrot.lane.b32.xlu0 %v163, 104
    %v180 = vpop.permute.xlu0 %179
    %181 = vrot.lane.b32.xlu0 %v164, 104
    %v182 = vpop.permute.xlu0 %181
    %187 = vrot.lane.b32.xlu0 %v159, 120
    %v188 = vpop.permute.xlu0 %187
    %189 = vrot.lane.b32.xlu0 %v161, 120
    %v190 = vpop.permute.xlu0 %189
    %193 = vrot.lane.b32.xlu0 %v159, 112
    %v194 = vpop.permute.xlu0 %193
    %195 = vrot.lane.b32.xlu0 %v161, 112
    %v196 = vpop.permute.xlu0 %195
    %199 = vrot.lane.b32.xlu0 %v159, 104
    %v200 = vpop.permute.xlu0 %199
    %201 = vrot.lane.b32.xlu0 %v161, 104
    %v202 = vpop.permute.xlu0 %201
    %v205 = vpack.c.bf16 %v163, %v163
    %v206 = vpack.c.bf16 %v164, %v164
    %v207 = vpack.c.bf16 %v168, %v168
    %v208 = vpack.c.bf16 %v170, %v170
    %v209 = vpack.c.bf16 %v174, %v174
    %v210 = vpack.c.bf16 %v176, %v176
    %v211 = vpack.c.bf16 %v180, %v180
    %v212 = vpack.c.bf16 %v182, %v182
    %v213 = vpack.c.bf16 %v159, %v159
    %v214 = vpack.c.bf16 %v161, %v161
    %v215 = vpack.c.bf16 %v188, %v188
    %v216 = vpack.c.bf16 %v190, %v190
    %v217 = vpack.c.bf16 %v194, %v194
    %v218 = vpack.c.bf16 %v196, %v196
    %v219 = vpack.c.bf16 %v200, %v200
    %v220 = vpack.c.bf16 %v202, %v202
    %v221 = vpack.c.bf16 %v116, %v116
    %v222 = vpack.c.bf16 %v121, %v121
    %v223 = vpack.c.bf16 %v124, %v124
    %v224 = vpack.c.bf16 %v127, %v127
    %v227 = vunpack.c.l.b16 %v205
    %v228 = vunpack.c.l.b16 %v206
    %v229 = vpack.c.b16 %v228, %v227
    %vm230 = vcmask 64512
    %v232 = vsel %vm230, %v229, 0
    %v235 = vsel %vm230, %v221, 0
    %237 = vmatpush.bf16.xpose.msra.mxu0 0
    %238 = vmatpush.bf16.xpose.msra.mxu0 0
    %239 = vmatpush.bf16.xpose.msra.mxu0 0
    %240 = vmatpush.bf16.xpose.msra.mxu0 0
    %241 = vmatpush.bf16.xpose.msra.mxu0 0
    %242 = vmatpush.bf16.xpose.msra.mxu0 0
    %243 = vmatpush.bf16.xpose.msra.mxu0 0
    %244 = vmatpush.bf16.xpose.msra.mxu0 %v235
    %245 = vmatmul.bf16.gmra.mxu0 %v232
    %v246 = vpop.f32.mrf.mxu0
    %v247 = vadd.f32 0.0, %v246
    %v248 = vpop.f32.mrf.mxu0
    %v249 = vadd.f32 0.0, %v248
    %250 = vdwg.mxu0
    %v253 = vunpack.c.l.b16 %v207
    %v254 = vunpack.c.l.b16 %v208
    %v255 = vpack.c.b16 %v254, %v253
    %v257 = vsel %vm230, %v255, 0
    %v260 = vsel %vm230, %v222, 0
    %262 = vmatpush.bf16.xpose.msra.mxu0 0
    %263 = vmatpush.bf16.xpose.msra.mxu0 0
    %264 = vmatpush.bf16.xpose.msra.mxu0 0
    %265 = vmatpush.bf16.xpose.msra.mxu0 0
    %266 = vmatpush.bf16.xpose.msra.mxu0 0
    %267 = vmatpush.bf16.xpose.msra.mxu0 0
    %268 = vmatpush.bf16.xpose.msra.mxu0 0
    %269 = vmatpush.bf16.xpose.msra.mxu0 %v260
    %270 = vmatmul.bf16.gmra.mxu0 %v257
    %v271 = vpop.f32.mrf.mxu0
    %v272 = vadd.f32 0.0, %v271
    %v273 = vpop.f32.mrf.mxu0
    %v274 = vadd.f32 0.0, %v273
    %275 = vdwg.mxu0
    %v278 = vunpack.c.l.b16 %v209
    %v279 = vunpack.c.l.b16 %v210
    %v280 = vpack.c.b16 %v279, %v278
    %v282 = vsel %vm230, %v280, 0
    %v285 = vsel %vm230, %v223, 0
    %287 = vmatpush.bf16.xpose.msra.mxu0 0
    %288 = vmatpush.bf16.xpose.msra.mxu0 0
    %289 = vmatpush.bf16.xpose.msra.mxu0 0
    %290 = vmatpush.bf16.xpose.msra.mxu0 0
    %291 = vmatpush.bf16.xpose.msra.mxu0 0
    %292 = vmatpush.bf16.xpose.msra.mxu0 0
    %293 = vmatpush.bf16.xpose.msra.mxu0 0
    %294 = vmatpush.bf16.xpose.msra.mxu0 %v285
    %295 = vmatmul.bf16.gmra.mxu0 %v282
    %v296 = vpop.f32.mrf.mxu0
    %v297 = vadd.f32 0.0, %v296
    %v298 = vpop.f32.mrf.mxu0
    %v299 = vadd.f32 0.0, %v298
    %300 = vdwg.mxu0
    %v303 = vunpack.c.l.b16 %v211
    %v304 = vunpack.c.l.b16 %v212
    %v305 = vpack.c.b16 %v304, %v303
    %v307 = vsel %vm230, %v305, 0
    %v310 = vsel %vm230, %v224, 0
    %312 = vmatpush.bf16.xpose.msra.mxu0 0
    %313 = vmatpush.bf16.xpose.msra.mxu0 0
    %314 = vmatpush.bf16.xpose.msra.mxu0 0
    %315 = vmatpush.bf16.xpose.msra.mxu0 0
    %316 = vmatpush.bf16.xpose.msra.mxu0 0
    %317 = vmatpush.bf16.xpose.msra.mxu0 0
    %318 = vmatpush.bf16.xpose.msra.mxu0 0
    %319 = vmatpush.bf16.xpose.msra.mxu0 %v310
    %320 = vmatmul.bf16.gmra.mxu0 %v307
    %v321 = vpop.f32.mrf.mxu0
    %v322 = vadd.f32 0.0, %v321
    %v323 = vpop.f32.mrf.mxu0
    %v324 = vadd.f32 0.0, %v323
    %325 = vdwg.mxu0
    %vm326 = vcmp.eq.s32.totalorder %v83, 0
    %vm327 = vcmp.eq.s32.totalorder %v84, 0
    %v328 = vsel %vm326, 1, 0
    %v329 = vsel %vm327, 1, 0
    %vm330 = vcmp.eq.s32.totalorder %v328, 1
    %vm331 = vcmp.eq.s32.totalorder %v329, 1
    %333 = vset.pattern.permute.xlu0 0
    %334 = vperm.xlu0 %333, %v247
    %v335 = vpop.permute.xlu0 %334
    %338 = vset.pattern.permute.xlu0 0
    %339 = vperm.xlu0 %338, %v249
    %v340 = vpop.permute.xlu0 %339
    %343 = vset.pattern.permute.xlu0 0
    %344 = vperm.xlu0 %343, %v272
    %v345 = vpop.permute.xlu0 %344
    %348 = vset.pattern.permute.xlu0 0
    %349 = vperm.xlu0 %348, %v274
    %v350 = vpop.permute.xlu0 %349
    %353 = vset.pattern.permute.xlu0 0
    %354 = vperm.xlu0 %353, %v297
    %v355 = vpop.permute.xlu0 %354
    %358 = vset.pattern.permute.xlu0 0
    %359 = vperm.xlu0 %358, %v299
    %v360 = vpop.permute.xlu0 %359
    %363 = vset.pattern.permute.xlu0 0
    %364 = vperm.xlu0 %363, %v322
    %v365 = vpop.permute.xlu0 %364
    %368 = vset.pattern.permute.xlu0 0
    %369 = vperm.xlu0 %368, %v324
    %v370 = vpop.permute.xlu0 %369
    %v372 = vsel %vm330, %v335, 0.0
    %v373 = vsel %vm331, %v340, 0.0
    %v374 = vsel %vm330, %v345, 0.0
    %v375 = vsel %vm331, %v350, 0.0
    %v376 = vsel %vm330, %v355, 0.0
    %v377 = vsel %vm331, %v360, 0.0
    %v378 = vsel %vm330, %v365, 0.0
    %v379 = vsel %vm331, %v370, 0.0
    %v380 = vadd.f32 %v372, 0.0
    %v381 = vadd.f32 %v373, 0.0
    %v382 = vadd.f32 %v374, 0.0
    %v383 = vadd.f32 %v375, 0.0
    %v384 = vadd.f32 %v376, 0.0
    %v385 = vadd.f32 %v377, 0.0
    %v386 = vadd.f32 %v378, 0.0
    %v387 = vadd.f32 %v379, 0.0
    %vm388 = vcmp.eq.s32.totalorder %v83, 1
    %vm389 = vcmp.eq.s32.totalorder %v84, 1
    %v390 = vsel %vm388, 1, 0
    %v391 = vsel %vm389, 1, 0
    %vm392 = vcmp.eq.s32.totalorder %v390, 1
    %vm393 = vcmp.eq.s32.totalorder %v391, 1
    %394 = vset.pattern.permute.xlu0 1
    %395 = vperm.xlu0 %394, %v247
    %v396 = vpop.permute.xlu0 %395
    %398 = vset.pattern.permute.xlu0 1
    %399 = vperm.xlu0 %398, %v249
    %v400 = vpop.permute.xlu0 %399
    %402 = vset.pattern.permute.xlu0 1
    %403 = vperm.xlu0 %402, %v272
    %v404 = vpop.permute.xlu0 %403
    %406 = vset.pattern.permute.xlu0 1
    %407 = vperm.xlu0 %406, %v274
    %v408 = vpop.permute.xlu0 %407
    %410 = vset.pattern.permute.xlu0 1
    %411 = vperm.xlu0 %410, %v297
    %v412 = vpop.permute.xlu0 %411
    %414 = vset.pattern.permute.xlu0 1
    %415 = vperm.xlu0 %414, %v299
    %v416 = vpop.permute.xlu0 %415
    %418 = vset.pattern.permute.xlu0 1
    %419 = vperm.xlu0 %418, %v322
    %v420 = vpop.permute.xlu0 %419
    %422 = vset.pattern.permute.xlu0 1
    %423 = vperm.xlu0 %422, %v324
    %v424 = vpop.permute.xlu0 %423
    %v426 = vsel %vm392, %v396, 0.0
    %v427 = vsel %vm393, %v400, 0.0
    %v428 = vsel %vm392, %v404, 0.0
    %v429 = vsel %vm393, %v408, 0.0
    %v430 = vsel %vm392, %v412, 0.0
    %v431 = vsel %vm393, %v416, 0.0
    %v432 = vsel %vm392, %v420, 0.0
    %v433 = vsel %vm393, %v424, 0.0
    %v434 = vadd.f32 %v380, %v426
    %v435 = vadd.f32 %v381, %v427
    %v436 = vadd.f32 %v382, %v428
    %v437 = vadd.f32 %v383, %v429
    %v438 = vadd.f32 %v384, %v430
    %v439 = vadd.f32 %v385, %v431
    %v440 = vadd.f32 %v386, %v432
    %v441 = vadd.f32 %v387, %v433
    %vm442 = vcmp.eq.s32.totalorder %v83, 2
    %vm443 = vcmp.eq.s32.totalorder %v84, 2
    %v444 = vsel %vm442, 1, 0
    %v445 = vsel %vm443, 1, 0
    %vm446 = vcmp.eq.s32.totalorder %v444, 1
    %vm447 = vcmp.eq.s32.totalorder %v445, 1
    %448 = vset.pattern.permute.xlu0 2
    %449 = vperm.xlu0 %448, %v247
    %v450 = vpop.permute.xlu0 %449
    %452 = vset.pattern.permute.xlu0 2
    %453 = vperm.xlu0 %452, %v249
    %v454 = vpop.permute.xlu0 %453
    %456 = vset.pattern.permute.xlu0 2
    %457 = vperm.xlu0 %456, %v272
    %v458 = vpop.permute.xlu0 %457
    %460 = vset.pattern.permute.xlu0 2
    %461 = vperm.xlu0 %460, %v274
    %v462 = vpop.permute.xlu0 %461
    %464 = vset.pattern.permute.xlu0 2
    %465 = vperm.xlu0 %464, %v297
    %v466 = vpop.permute.xlu0 %465
    %468 = vset.pattern.permute.xlu0 2
    %469 = vperm.xlu0 %468, %v299
    %v470 = vpop.permute.xlu0 %469
    %472 = vset.pattern.permute.xlu0 2
    %473 = vperm.xlu0 %472, %v322
    %v474 = vpop.permute.xlu0 %473
    %476 = vset.pattern.permute.xlu0 2
    %477 = vperm.xlu0 %476, %v324
    %v478 = vpop.permute.xlu0 %477
    %v480 = vsel %vm446, %v450, 0.0
    %v481 = vsel %vm447, %v454, 0.0
    %v482 = vsel %vm446, %v458, 0.0
    %v483 = vsel %vm447, %v462, 0.0
    %v484 = vsel %vm446, %v466, 0.0
    %v485 = vsel %vm447, %v470, 0.0
    %v486 = vsel %vm446, %v474, 0.0
    %v487 = vsel %vm447, %v478, 0.0
    %v488 = vadd.f32 %v434, %v480
    %v489 = vadd.f32 %v435, %v481
    %v490 = vadd.f32 %v436, %v482
    %v491 = vadd.f32 %v437, %v483
    %v492 = vadd.f32 %v438, %v484
    %v493 = vadd.f32 %v439, %v485
    %v494 = vadd.f32 %v440, %v486
    %v495 = vadd.f32 %v441, %v487
    %vm496 = vcmp.eq.s32.totalorder %v83, 3
    %vm497 = vcmp.eq.s32.totalorder %v84, 3
    %v498 = vsel %vm496, 1, 0
    %v499 = vsel %vm497, 1, 0
    %vm500 = vcmp.eq.s32.totalorder %v498, 1
    %vm501 = vcmp.eq.s32.totalorder %v499, 1
    %502 = vset.pattern.permute.xlu0 3
    %503 = vperm.xlu0 %502, %v247
    %v504 = vpop.permute.xlu0 %503
    %506 = vset.pattern.permute.xlu0 3
    %507 = vperm.xlu0 %506, %v249
    %v508 = vpop.permute.xlu0 %507
    %510 = vset.pattern.permute.xlu0 3
    %511 = vperm.xlu0 %510, %v272
    %v512 = vpop.permute.xlu0 %511
    %514 = vset.pattern.permute.xlu0 3
    %515 = vperm.xlu0 %514, %v274
    %v516 = vpop.permute.xlu0 %515
    %518 = vset.pattern.permute.xlu0 3
    %519 = vperm.xlu0 %518, %v297
    %v520 = vpop.permute.xlu0 %519
    %522 = vset.pattern.permute.xlu0 3
    %523 = vperm.xlu0 %522, %v299
    %v524 = vpop.permute.xlu0 %523
    %526 = vset.pattern.permute.xlu0 3
    %527 = vperm.xlu0 %526, %v322
    %v528 = vpop.permute.xlu0 %527
    %530 = vset.pattern.permute.xlu0 3
    %531 = vperm.xlu0 %530, %v324
    %v532 = vpop.permute.xlu0 %531
    %v534 = vsel %vm500, %v504, 0.0
    %v535 = vsel %vm501, %v508, 0.0
    %v536 = vsel %vm500, %v512, 0.0
    %v537 = vsel %vm501, %v516, 0.0
    %v538 = vsel %vm500, %v520, 0.0
    %v539 = vsel %vm501, %v524, 0.0
    %v540 = vsel %vm500, %v528, 0.0
    %v541 = vsel %vm501, %v532, 0.0
    %v542 = vadd.f32 %v488, %v534
    %v543 = vadd.f32 %v489, %v535
    %v544 = vadd.f32 %v490, %v536
    %v545 = vadd.f32 %v491, %v537
    %v546 = vadd.f32 %v492, %v538
    %v547 = vadd.f32 %v493, %v539
    %v548 = vadd.f32 %v494, %v540
    %v549 = vadd.f32 %v495, %v541
    %vm550 = vcmp.eq.s32.totalorder %v83, 4
    %vm551 = vcmp.eq.s32.totalorder %v84, 4
    %v552 = vsel %vm550, 1, 0
    %v553 = vsel %vm551, 1, 0
    %vm554 = vcmp.eq.s32.totalorder %v552, 1
    %vm555 = vcmp.eq.s32.totalorder %v553, 1
    %556 = vset.pattern.permute.xlu0 4
    %557 = vperm.xlu0 %556, %v247
    %v558 = vpop.permute.xlu0 %557
    %560 = vset.pattern.permute.xlu0 4
    %561 = vperm.xlu0 %560, %v249
    %v562 = vpop.permute.xlu0 %561
    %564 = vset.pattern.permute.xlu0 4
    %565 = vperm.xlu0 %564, %v272
    %v566 = vpop.permute.xlu0 %565
    %568 = vset.pattern.permute.xlu0 4
    %569 = vperm.xlu0 %568, %v274
    %v570 = vpop.permute.xlu0 %569
    %572 = vset.pattern.permute.xlu0 4
    %573 = vperm.xlu0 %572, %v297
    %v574 = vpop.permute.xlu0 %573
    %576 = vset.pattern.permute.xlu0 4
    %577 = vperm.xlu0 %576, %v299
    %v578 = vpop.permute.xlu0 %577
    %580 = vset.pattern.permute.xlu0 4
    %581 = vperm.xlu0 %580, %v322
    %v582 = vpop.permute.xlu0 %581
    %584 = vset.pattern.permute.xlu0 4
    %585 = vperm.xlu0 %584, %v324
    %v586 = vpop.permute.xlu0 %585
    %v588 = vsel %vm554, %v558, 0.0
    %v589 = vsel %vm555, %v562, 0.0
    %v590 = vsel %vm554, %v566, 0.0
    %v591 = vsel %vm555, %v570, 0.0
    %v592 = vsel %vm554, %v574, 0.0
    %v593 = vsel %vm555, %v578, 0.0
    %v594 = vsel %vm554, %v582, 0.0
    %v595 = vsel %vm555, %v586, 0.0
    %v596 = vadd.f32 %v542, %v588
    %v597 = vadd.f32 %v543, %v589
    %v598 = vadd.f32 %v544, %v590
    %v599 = vadd.f32 %v545, %v591
    %v600 = vadd.f32 %v546, %v592
    %v601 = vadd.f32 %v547, %v593
    %v602 = vadd.f32 %v548, %v594
    %v603 = vadd.f32 %v549, %v595
    %vm604 = vcmp.eq.s32.totalorder %v83, 5
    %vm605 = vcmp.eq.s32.totalorder %v84, 5
    %v606 = vsel %vm604, 1, 0
    %v607 = vsel %vm605, 1, 0
    %vm608 = vcmp.eq.s32.totalorder %v606, 1
    %vm609 = vcmp.eq.s32.totalorder %v607, 1
    %610 = vset.pattern.permute.xlu0 5
    %611 = vperm.xlu0 %610, %v247
    %v612 = vpop.permute.xlu0 %611
    %614 = vset.pattern.permute.xlu0 5
    %615 = vperm.xlu0 %614, %v249
    %v616 = vpop.permute.xlu0 %615
    %618 = vset.pattern.permute.xlu0 5
    %619 = vperm.xlu0 %618, %v272
    %v620 = vpop.permute.xlu0 %619
    %622 = vset.pattern.permute.xlu0 5
    %623 = vperm.xlu0 %622, %v274
    %v624 = vpop.permute.xlu0 %623
    %626 = vset.pattern.permute.xlu0 5
    %627 = vperm.xlu0 %626, %v297
    %v628 = vpop.permute.xlu0 %627
    %630 = vset.pattern.permute.xlu0 5
    %631 = vperm.xlu0 %630, %v299
    %v632 = vpop.permute.xlu0 %631
    %634 = vset.pattern.permute.xlu0 5
    %635 = vperm.xlu0 %634, %v322
    %v636 = vpop.permute.xlu0 %635
    %638 = vset.pattern.permute.xlu0 5
    %639 = vperm.xlu0 %638, %v324
    %v640 = vpop.permute.xlu0 %639
    %v642 = vsel %vm608, %v612, 0.0
    %v643 = vsel %vm609, %v616, 0.0
    %v644 = vsel %vm608, %v620, 0.0
    %v645 = vsel %vm609, %v624, 0.0
    %v646 = vsel %vm608, %v628, 0.0
    %v647 = vsel %vm609, %v632, 0.0
    %v648 = vsel %vm608, %v636, 0.0
    %v649 = vsel %vm609, %v640, 0.0
    %v650 = vadd.f32 %v596, %v642
    %v651 = vadd.f32 %v597, %v643
    %v652 = vadd.f32 %v598, %v644
    %v653 = vadd.f32 %v599, %v645
    %v654 = vadd.f32 %v600, %v646
    %v655 = vadd.f32 %v601, %v647
    %v656 = vadd.f32 %v602, %v648
    %v657 = vadd.f32 %v603, %v649
    %vm658 = vcmp.eq.s32.totalorder %v83, 6
    %vm659 = vcmp.eq.s32.totalorder %v84, 6
    %v660 = vsel %vm658, 1, 0
    %v661 = vsel %vm659, 1, 0
    %vm662 = vcmp.eq.s32.totalorder %v660, 1
    %vm663 = vcmp.eq.s32.totalorder %v661, 1
    %664 = vset.pattern.permute.xlu0 6
    %665 = vperm.xlu0 %664, %v247
    %v666 = vpop.permute.xlu0 %665
    %668 = vset.pattern.permute.xlu0 6
    %669 = vperm.xlu0 %668, %v249
    %v670 = vpop.permute.xlu0 %669
    %672 = vset.pattern.permute.xlu0 6
    %673 = vperm.xlu0 %672, %v272
    %v674 = vpop.permute.xlu0 %673
    %676 = vset.pattern.permute.xlu0 6
    %677 = vperm.xlu0 %676, %v274
    %v678 = vpop.permute.xlu0 %677
    %680 = vset.pattern.permute.xlu0 6
    %681 = vperm.xlu0 %680, %v297
    %v682 = vpop.permute.xlu0 %681
    %684 = vset.pattern.permute.xlu0 6
    %685 = vperm.xlu0 %684, %v299
    %v686 = vpop.permute.xlu0 %685
    %688 = vset.pattern.permute.xlu0 6
    %689 = vperm.xlu0 %688, %v322
    %v690 = vpop.permute.xlu0 %689
    %692 = vset.pattern.permute.xlu0 6
    %693 = vperm.xlu0 %692, %v324
    %v694 = vpop.permute.xlu0 %693
    %v696 = vsel %vm662, %v666, 0.0
    %v697 = vsel %vm663, %v670, 0.0
    %v698 = vsel %vm662, %v674, 0.0
    %v699 = vsel %vm663, %v678, 0.0
    %v700 = vsel %vm662, %v682, 0.0
    %v701 = vsel %vm663, %v686, 0.0
    %v702 = vsel %vm662, %v690, 0.0
    %v703 = vsel %vm663, %v694, 0.0
    %v704 = vadd.f32 %v650, %v696
    %v705 = vadd.f32 %v651, %v697
    %v706 = vadd.f32 %v652, %v698
    %v707 = vadd.f32 %v653, %v699
    %v708 = vadd.f32 %v654, %v700
    %v709 = vadd.f32 %v655, %v701
    %v710 = vadd.f32 %v656, %v702
    %v711 = vadd.f32 %v657, %v703
    %vm712 = vcmp.eq.s32.totalorder %v83, 7
    %vm713 = vcmp.eq.s32.totalorder %v84, 7
    %v714 = vsel %vm712, 1, 0
    %v715 = vsel %vm713, 1, 0
    %vm716 = vcmp.eq.s32.totalorder %v714, 1
    %vm717 = vcmp.eq.s32.totalorder %v715, 1
    %718 = vset.pattern.permute.xlu0 7
    %719 = vperm.xlu0 %718, %v247
    %v720 = vpop.permute.xlu0 %719
    %722 = vset.pattern.permute.xlu0 7
    %723 = vperm.xlu0 %722, %v249
    %v724 = vpop.permute.xlu0 %723
    %726 = vset.pattern.permute.xlu0 7
    %727 = vperm.xlu0 %726, %v272
    %v728 = vpop.permute.xlu0 %727
    %730 = vset.pattern.permute.xlu0 7
    %731 = vperm.xlu0 %730, %v274
    %v732 = vpop.permute.xlu0 %731
    %734 = vset.pattern.permute.xlu0 7
    %735 = vperm.xlu0 %734, %v297
    %v736 = vpop.permute.xlu0 %735
    %738 = vset.pattern.permute.xlu0 7
    %739 = vperm.xlu0 %738, %v299
    %v740 = vpop.permute.xlu0 %739
    %742 = vset.pattern.permute.xlu0 7
    %743 = vperm.xlu0 %742, %v322
    %v744 = vpop.permute.xlu0 %743
    %746 = vset.pattern.permute.xlu0 7
    %747 = vperm.xlu0 %746, %v324
    %v748 = vpop.permute.xlu0 %747
    %v750 = vsel %vm716, %v720, 0.0
    %v751 = vsel %vm717, %v724, 0.0
    %v752 = vsel %vm716, %v728, 0.0
    %v753 = vsel %vm717, %v732, 0.0
    %v754 = vsel %vm716, %v736, 0.0
    %v755 = vsel %vm717, %v740, 0.0
    %v756 = vsel %vm716, %v744, 0.0
    %v757 = vsel %vm717, %v748, 0.0
    %v758 = vadd.f32 %v704, %v750
    %v759 = vadd.f32 %v705, %v751
    %v760 = vadd.f32 %v706, %v752
    %v761 = vadd.f32 %v707, %v753
    %v762 = vadd.f32 %v708, %v754
    %v763 = vadd.f32 %v709, %v755
    %v764 = vadd.f32 %v710, %v756
    %v765 = vadd.f32 %v711, %v757
    %v768 = vunpack.c.l.b16 %v213
    %v769 = vunpack.c.l.b16 %v214
    %v770 = vpack.c.b16 %v769, %v768
    %771 = vrot.lane.b32.xlu0 %v770, 96
    %v772 = vpop.permute.xlu0 %771
    %v774 = vsel %vm230, %v772, 0
    %776 = vmatpush.bf16.xpose.msra.mxu0 0
    %777 = vmatpush.bf16.xpose.msra.mxu0 0
    %778 = vmatpush.bf16.xpose.msra.mxu0 0
    %779 = vmatpush.bf16.xpose.msra.mxu0 0
    %780 = vmatpush.bf16.xpose.msra.mxu0 0
    %781 = vmatpush.bf16.xpose.msra.mxu0 0
    %782 = vmatpush.bf16.xpose.msra.mxu0 0
    %783 = vmatpush.bf16.xpose.msra.mxu0 %v774
    %784 = vmatmul.bf16.gmra.mxu0 %v232
    %v785 = vpop.f32.mrf.mxu0
    %v786 = vadd.f32 %v758, %v785
    %v787 = vpop.f32.mrf.mxu0
    %v788 = vadd.f32 %v759, %v787
    %789 = vdwg.mxu0
    %v792 = vunpack.c.l.b16 %v215
    %v793 = vunpack.c.l.b16 %v216
    %v794 = vpack.c.b16 %v793, %v792
    %795 = vrot.lane.b32.xlu0 %v794, 96
    %v796 = vpop.permute.xlu0 %795
    %v798 = vsel %vm230, %v796, 0
    %800 = vmatpush.bf16.xpose.msra.mxu0 0
    %801 = vmatpush.bf16.xpose.msra.mxu0 0
    %802 = vmatpush.bf16.xpose.msra.mxu0 0
    %803 = vmatpush.bf16.xpose.msra.mxu0 0
    %804 = vmatpush.bf16.xpose.msra.mxu0 0
    %805 = vmatpush.bf16.xpose.msra.mxu0 0
    %806 = vmatpush.bf16.xpose.msra.mxu0 0
    %807 = vmatpush.bf16.xpose.msra.mxu0 %v798
    %808 = vmatmul.bf16.gmra.mxu0 %v257
    %v809 = vpop.f32.mrf.mxu0
    %v810 = vadd.f32 %v760, %v809
    %v811 = vpop.f32.mrf.mxu0
    %v812 = vadd.f32 %v761, %v811
    %813 = vdwg.mxu0
    %v816 = vunpack.c.l.b16 %v217
    %v817 = vunpack.c.l.b16 %v218
    %v818 = vpack.c.b16 %v817, %v816
    %819 = vrot.lane.b32.xlu0 %v818, 96
    %v820 = vpop.permute.xlu0 %819
    %v822 = vsel %vm230, %v820, 0
    %824 = vmatpush.bf16.xpose.msra.mxu0 0
    %825 = vmatpush.bf16.xpose.msra.mxu0 0
    %826 = vmatpush.bf16.xpose.msra.mxu0 0
    %827 = vmatpush.bf16.xpose.msra.mxu0 0
    %828 = vmatpush.bf16.xpose.msra.mxu0 0
    %829 = vmatpush.bf16.xpose.msra.mxu0 0
    %830 = vmatpush.bf16.xpose.msra.mxu0 0
    %831 = vmatpush.bf16.xpose.msra.mxu0 %v822
    %832 = vmatmul.bf16.gmra.mxu0 %v282
    %v833 = vpop.f32.mrf.mxu0
    %v834 = vadd.f32 %v762, %v833
    %v835 = vpop.f32.mrf.mxu0
    %v836 = vadd.f32 %v763, %v835
    %837 = vdwg.mxu0
    %v840 = vunpack.c.l.b16 %v219
    %v841 = vunpack.c.l.b16 %v220
    %v842 = vpack.c.b16 %v841, %v840
    %843 = vrot.lane.b32.xlu0 %v842, 96
    %v844 = vpop.permute.xlu0 %843
    %v846 = vsel %vm230, %v844, 0
    %848 = vmatpush.bf16.xpose.msra.mxu0 0
    %849 = vmatpush.bf16.xpose.msra.mxu0 0
    %850 = vmatpush.bf16.xpose.msra.mxu0 0
    %851 = vmatpush.bf16.xpose.msra.mxu0 0
    %852 = vmatpush.bf16.xpose.msra.mxu0 0
    %853 = vmatpush.bf16.xpose.msra.mxu0 0
    %854 = vmatpush.bf16.xpose.msra.mxu0 0
    %855 = vmatpush.bf16.xpose.msra.mxu0 %v846
    %856 = vmatmul.bf16.gmra.mxu0 %v307
    %v857 = vpop.f32.mrf.mxu0
    %v858 = vadd.f32 %v764, %v857
    %v859 = vpop.f32.mrf.mxu0
    %v860 = vadd.f32 %v765, %v859
    %861 = vdwg.mxu0
    %v862 = vunpack.c.l.bf16 %v81
    %v863 = vunpack.c.l.bf16 %v82
    %vm864 = vcmp.gt.f32.partialorder %v862, 0.0
    %vm865 = vcmp.gt.f32.partialorder %v863, 0.0
    %v866 = vsel %vm864, 1, 0
    %v867 = vsel %vm865, 1, 0
    %vm868 = vcmp.eq.s32.totalorder %v866, 1
    %vm869 = vcmp.eq.s32.totalorder %v867, 1
    %v870 = vsel %vm868, %v786, -1e+30
    %v871 = vsel %vm869, %v788, -1e+30
    %v872 = vsel %vm868, %v810, -1e+30
    %v873 = vsel %vm869, %v812, -1e+30
    %v874 = vsel %vm868, %v834, -1e+30
    %v875 = vsel %vm869, %v836, -1e+30
    %v876 = vsel %vm868, %v858, -1e+30
    %v877 = vsel %vm869, %v860, -1e+30
    %vm878 = vcmask 130048
    %v879 = vsel %vm878, %v870, -inf
    %880 = vmax.xlane.f32.xlu0 %v879
    %v881 = vpop.xlane.xlu0 %880
    %v882 = vsel %vm878, %v871, -inf
    %883 = vmax.xlane.f32.xlu0 %v882
    %v884 = vpop.xlane.xlu0 %883
    %v885 = vsel %vm878, %v872, -inf
    %886 = vmax.xlane.f32.xlu0 %v885
    %v887 = vpop.xlane.xlu0 %886
    %v888 = vsel %vm878, %v873, -inf
    %889 = vmax.xlane.f32.xlu0 %v888
    %v890 = vpop.xlane.xlu0 %889
    %v891 = vsel %vm878, %v874, -inf
    %892 = vmax.xlane.f32.xlu0 %v891
    %v893 = vpop.xlane.xlu0 %892
    %v894 = vsel %vm878, %v875, -inf
    %895 = vmax.xlane.f32.xlu0 %v894
    %v896 = vpop.xlane.xlu0 %895
    %v897 = vsel %vm878, %v876, -inf
    %898 = vmax.xlane.f32.xlu0 %v897
    %v899 = vpop.xlane.xlu0 %898
    %v900 = vsel %vm878, %v877, -inf
    %901 = vmax.xlane.f32.xlu0 %v900
    %v902 = vpop.xlane.xlu0 %901
    %v903 = vsub.f32 %v870, %v881
    %v904 = vsub.f32 %v871, %v884
    %v905 = vsub.f32 %v872, %v887
    %v906 = vsub.f32 %v873, %v890
    %v907 = vsub.f32 %v874, %v893
    %v908 = vsub.f32 %v875, %v896
    %v909 = vsub.f32 %v876, %v899
    %v910 = vsub.f32 %v877, %v902
    %v911 = vmul.f32 %v903, 1.442695
    %v912 = vpow.pop %v911
    %v913 = vmul.f32 %v904, 1.442695
    %v914 = vpow.pop %v913
    %v915 = vmul.f32 %v905, 1.442695
    %v916 = vpow.pop %v915
    %v917 = vmul.f32 %v906, 1.442695
    %v918 = vpow.pop %v917
    %v919 = vmul.f32 %v907, 1.442695
    %v920 = vpow.pop %v919
    %v921 = vmul.f32 %v908, 1.442695
    %v922 = vpow.pop %v921
    %v923 = vmul.f32 %v909, 1.442695
    %v924 = vpow.pop %v923
    %v925 = vmul.f32 %v910, 1.442695
    %v926 = vpow.pop %v925
    %v927 = vsel %vm878, %v912, 0.0
    %928 = vadd.xlane.f32.xlu0 %v927
    %v929 = vpop.xlane.xlu0 %928
    %v930 = vsel %vm878, %v914, 0.0
    %931 = vadd.xlane.f32.xlu0 %v930
    %v932 = vpop.xlane.xlu0 %931
    %v933 = vsel %vm878, %v916, 0.0
    %934 = vadd.xlane.f32.xlu0 %v933
    %v935 = vpop.xlane.xlu0 %934
    %v936 = vsel %vm878, %v918, 0.0
    %937 = vadd.xlane.f32.xlu0 %v936
    %v938 = vpop.xlane.xlu0 %937
    %v939 = vsel %vm878, %v920, 0.0
    %940 = vadd.xlane.f32.xlu0 %v939
    %v941 = vpop.xlane.xlu0 %940
    %v942 = vsel %vm878, %v922, 0.0
    %943 = vadd.xlane.f32.xlu0 %v942
    %v944 = vpop.xlane.xlu0 %943
    %v945 = vsel %vm878, %v924, 0.0
    %946 = vadd.xlane.f32.xlu0 %v945
    %v947 = vpop.xlane.xlu0 %946
    %v948 = vsel %vm878, %v926, 0.0
    %949 = vadd.xlane.f32.xlu0 %v948
    %v950 = vpop.xlane.xlu0 %949
    %v951 = vmax.f32 %v929, 1e-30
    %v952 = vmax.f32 %v932, 1e-30
    %v953 = vmax.f32 %v935, 1e-30
    %v954 = vmax.f32 %v938, 1e-30
    %v955 = vmax.f32 %v941, 1e-30
    %v956 = vmax.f32 %v944, 1e-30
    %v957 = vmax.f32 %v947, 1e-30
    %v958 = vmax.f32 %v950, 1e-30
    %v959 = vrcp.pop %v951
    %v960 = vrcp.pop %v952
    %v961 = vrcp.pop %v953
    %v962 = vrcp.pop %v954
    %v963 = vrcp.pop %v955
    %v964 = vrcp.pop %v956
    %v965 = vrcp.pop %v957
    %v966 = vrcp.pop %v958
    %v967 = vmul.f32 %v912, %v959
    %v968 = vmul.f32 %v914, %v960
    %v969 = vmul.f32 %v916, %v961
    %v970 = vmul.f32 %v918, %v962
    %v971 = vmul.f32 %v920, %v963
    %v972 = vmul.f32 %v922, %v964
    %v973 = vmul.f32 %v924, %v965
    %v974 = vmul.f32 %v926, %v966
    %vm975 = vcmp.gt.f32.partialorder %v881, -1e+29
    %vm976 = vcmp.gt.f32.partialorder %v884, -1e+29
    %vm977 = vcmp.gt.f32.partialorder %v887, -1e+29
    %vm978 = vcmp.gt.f32.partialorder %v890, -1e+29
    %vm979 = vcmp.gt.f32.partialorder %v893, -1e+29
    %vm980 = vcmp.gt.f32.partialorder %v896, -1e+29
    %vm981 = vcmp.gt.f32.partialorder %v899, -1e+29
    %vm982 = vcmp.gt.f32.partialorder %v902, -1e+29
    %v983 = vsel %vm975, 1, 0
    %v984 = vsel %vm976, 1, 0
    %v985 = vsel %vm977, 1, 0
    %v986 = vsel %vm978, 1, 0
    %v987 = vsel %vm979, 1, 0
    %v988 = vsel %vm980, 1, 0
    %v989 = vsel %vm981, 1, 0
    %v990 = vsel %vm982, 1, 0
    %vm991 = vcmp.eq.s32.totalorder %v983, 1
    %vm992 = vcmp.eq.s32.totalorder %v984, 1
    %vm993 = vcmp.eq.s32.totalorder %v985, 1
    %vm994 = vcmp.eq.s32.totalorder %v986, 1
    %vm995 = vcmp.eq.s32.totalorder %v987, 1
    %vm996 = vcmp.eq.s32.totalorder %v988, 1
    %vm997 = vcmp.eq.s32.totalorder %v989, 1
    %vm998 = vcmp.eq.s32.totalorder %v990, 1
    %v999 = vsel %vm991, %v967, 0.0
    %v1000 = vsel %vm992, %v968, 0.0
    %v1001 = vsel %vm993, %v969, 0.0
    %v1002 = vsel %vm994, %v970, 0.0
    %v1003 = vsel %vm995, %v971, 0.0
    %v1004 = vsel %vm996, %v972, 0.0
    %v1005 = vsel %vm997, %v973, 0.0
    %v1006 = vsel %vm998, %v974, 0.0
    %v1007 = vmul.f32 %v999, 0.85
    %v1008 = vmul.f32 %v1000, 0.85
    %v1009 = vmul.f32 %v1001, 0.85
    %v1010 = vmul.f32 %v1002, 0.85
    %v1011 = vmul.f32 %v1003, 0.85
    %v1012 = vmul.f32 %v1004, 0.85
    %v1013 = vmul.f32 %v1005, 0.85
    %v1014 = vmul.f32 %v1006, 0.85
    %v1015 = vpack.c.bf16 %v1007, %v1007
    %v1016 = vpack.c.bf16 %v1008, %v1008
    %v1017 = vpack.c.bf16 %v1009, %v1009
    %v1018 = vpack.c.bf16 %v1010, %v1010
    %v1019 = vpack.c.bf16 %v1011, %v1011
    %v1020 = vpack.c.bf16 %v1012, %v1012
    %v1021 = vpack.c.bf16 %v1013, %v1013
    %v1022 = vpack.c.bf16 %v1014, %v1014
    %v1023 = vmul.f32 %v159, 0.15
    %v1024 = vmul.f32 %v161, 0.15
    %v1025 = vmul.f32 %v188, 0.15
    %v1026 = vmul.f32 %v190, 0.15
    %v1027 = vmul.f32 %v194, 0.15
    %v1028 = vmul.f32 %v196, 0.15
    %v1029 = vmul.f32 %v200, 0.15
    %v1030 = vmul.f32 %v202, 0.15
    %v1033 = vunpack.c.l.b16 %v1015
    %v1034 = vunpack.c.l.b16 %v1016
    %v1035 = vpack.c.b16 %v1034, %v1033
    %1036 = vrot.lane.b32.xlu0 %v770, 64
    %v1037 = vpop.permute.xlu0 %1036
    %1041 = vrot.lane.b32.xlu0 %v1023, 64
    %v1042 = vpop.permute.xlu0 %1041
    %1043 = vrot.lane.b32.xlu0 %v1024, 64
    %v1044 = vpop.permute.xlu0 %1043
    %v1048 = vsel %vm878, %v1035, 0
    %1050 = vmatpush.bf16.msra.mxu0 0
    %1051 = vmatpush.bf16.msra.mxu0 0
    %1052 = vmatpush.bf16.msra.mxu0 0
    %1053 = vmatpush.bf16.msra.mxu0 0
    %1054 = vmatpush.bf16.msra.mxu0 0
    %1055 = vmatpush.bf16.msra.mxu0 0
    %1056 = vmatpush.bf16.msra.mxu0 0
    %1057 = vmatpush.bf16.msra.mxu0 %v1037
    %1058 = vmatmul.bf16.gmra.mxu0 %v1048
    %v1059 = vpop.f32.mrf.mxu0
    %v1060 = vadd.f32 %v1042, %v1059
    %v1061 = vpop.f32.mrf.mxu0
    %v1062 = vadd.f32 %v1044, %v1061
    %1063 = vdwg.mxu0
    %v1066 = vunpack.c.l.b16 %v1017
    %v1067 = vunpack.c.l.b16 %v1018
    %v1068 = vpack.c.b16 %v1067, %v1066
    %1069 = vrot.lane.b32.xlu0 %v794, 64
    %v1070 = vpop.permute.xlu0 %1069
    %1074 = vrot.lane.b32.xlu0 %v1025, 64
    %v1075 = vpop.permute.xlu0 %1074
    %1076 = vrot.lane.b32.xlu0 %v1026, 64
    %v1077 = vpop.permute.xlu0 %1076
    %v1081 = vsel %vm878, %v1068, 0
    %1083 = vmatpush.bf16.msra.mxu0 0
    %1084 = vmatpush.bf16.msra.mxu0 0
    %1085 = vmatpush.bf16.msra.mxu0 0
    %1086 = vmatpush.bf16.msra.mxu0 0
    %1087 = vmatpush.bf16.msra.mxu0 0
    %1088 = vmatpush.bf16.msra.mxu0 0
    %1089 = vmatpush.bf16.msra.mxu0 0
    %1090 = vmatpush.bf16.msra.mxu0 %v1070
    %1091 = vmatmul.bf16.gmra.mxu0 %v1081
    %v1092 = vpop.f32.mrf.mxu0
    %v1093 = vadd.f32 %v1075, %v1092
    %v1094 = vpop.f32.mrf.mxu0
    %v1095 = vadd.f32 %v1077, %v1094
    %1096 = vdwg.mxu0
    %v1099 = vunpack.c.l.b16 %v1019
    %v1100 = vunpack.c.l.b16 %v1020
    %v1101 = vpack.c.b16 %v1100, %v1099
    %1102 = vrot.lane.b32.xlu0 %v818, 64
    %v1103 = vpop.permute.xlu0 %1102
    %1107 = vrot.lane.b32.xlu0 %v1027, 64
    %v1108 = vpop.permute.xlu0 %1107
    %1109 = vrot.lane.b32.xlu0 %v1028, 64
    %v1110 = vpop.permute.xlu0 %1109
    %v1114 = vsel %vm878, %v1101, 0
    %1116 = vmatpush.bf16.msra.mxu0 0
    %1117 = vmatpush.bf16.msra.mxu0 0
    %1118 = vmatpush.bf16.msra.mxu0 0
    %1119 = vmatpush.bf16.msra.mxu0 0
    %1120 = vmatpush.bf16.msra.mxu0 0
    %1121 = vmatpush.bf16.msra.mxu0 0
    %1122 = vmatpush.bf16.msra.mxu0 0
    %1123 = vmatpush.bf16.msra.mxu0 %v1103
    %1124 = vmatmul.bf16.gmra.mxu0 %v1114
    %v1125 = vpop.f32.mrf.mxu0
    %v1126 = vadd.f32 %v1108, %v1125
    %v1127 = vpop.f32.mrf.mxu0
    %v1128 = vadd.f32 %v1110, %v1127
    %1129 = vdwg.mxu0
    %v1132 = vunpack.c.l.b16 %v1021
    %v1133 = vunpack.c.l.b16 %v1022
    %v1134 = vpack.c.b16 %v1133, %v1132
    %1135 = vrot.lane.b32.xlu0 %v842, 64
    %v1136 = vpop.permute.xlu0 %1135
    %1140 = vrot.lane.b32.xlu0 %v1029, 64
    %v1141 = vpop.permute.xlu0 %1140
    %1142 = vrot.lane.b32.xlu0 %v1030, 64
    %v1143 = vpop.permute.xlu0 %1142
    %v1147 = vsel %vm878, %v1134, 0
    %1149 = vmatpush.bf16.msra.mxu0 0
    %1150 = vmatpush.bf16.msra.mxu0 0
    %1151 = vmatpush.bf16.msra.mxu0 0
    %1152 = vmatpush.bf16.msra.mxu0 0
    %1153 = vmatpush.bf16.msra.mxu0 0
    %1154 = vmatpush.bf16.msra.mxu0 0
    %1155 = vmatpush.bf16.msra.mxu0 0
    %1156 = vmatpush.bf16.msra.mxu0 %v1136
    %1157 = vmatmul.bf16.gmra.mxu0 %v1147
    %v1158 = vpop.f32.mrf.mxu0
    %v1159 = vadd.f32 %v1141, %v1158
    %v1160 = vpop.f32.mrf.mxu0
    %v1161 = vadd.f32 %v1143, %v1160
    %1162 = vdwg.mxu0
    %v1163 = vpack.c.bf16 %v1060, %v1060
    %v1164 = vpack.c.bf16 %v1062, %v1062
    %v1165 = vpack.c.bf16 %v1093, %v1093
    %v1166 = vpack.c.bf16 %v1095, %v1095
    %v1167 = vpack.c.bf16 %v1126, %v1126
    %v1168 = vpack.c.bf16 %v1128, %v1128
    %v1169 = vpack.c.bf16 %v1159, %v1159
    %v1170 = vpack.c.bf16 %v1161, %v1161
    %v1173 = vunpack.c.l.b16 %v1163
    %v1174 = vunpack.c.l.b16 %v1164
    %v1175 = vpack.c.b16 %v1174, %v1173
    %1177 = vmatpush.bf16.msra.mxu0 0
    %1178 = vmatpush.bf16.msra.mxu0 0
    %1179 = vmatpush.bf16.msra.mxu0 0
    %1180 = vmatpush.bf16.msra.mxu0 0
    %1181 = vmatpush.bf16.msra.mxu0 0
    %1182 = vmatpush.bf16.msra.mxu0 0
    %1183 = vmatpush.bf16.msra.mxu0 0
    %1184 = vmatpush.bf16.msra.mxu0 %v1175
    %1185 = vmatmul.bf16.gmra.mxu0 %v1048
    %v1186 = vpop.f32.mrf.mxu0
    %v1187 = vadd.f32 %v1042, %v1186
    %v1188 = vpop.f32.mrf.mxu0
    %v1189 = vadd.f32 %v1044, %v1188
    %1190 = vdwg.mxu0
    %v1193 = vunpack.c.l.b16 %v1165
    %v1194 = vunpack.c.l.b16 %v1166
    %v1195 = vpack.c.b16 %v1194, %v1193
    %1197 = vmatpush.bf16.msra.mxu0 0
    %1198 = vmatpush.bf16.msra.mxu0 0
    %1199 = vmatpush.bf16.msra.mxu0 0
    %1200 = vmatpush.bf16.msra.mxu0 0
    %1201 = vmatpush.bf16.msra.mxu0 0
    %1202 = vmatpush.bf16.msra.mxu0 0
    %1203 = vmatpush.bf16.msra.mxu0 0
    %1204 = vmatpush.bf16.msra.mxu0 %v1195
    %1205 = vmatmul.bf16.gmra.mxu0 %v1081
    %v1206 = vpop.f32.mrf.mxu0
    %v1207 = vadd.f32 %v1075, %v1206
    %v1208 = vpop.f32.mrf.mxu0
    %v1209 = vadd.f32 %v1077, %v1208
    %1210 = vdwg.mxu0
    %v1213 = vunpack.c.l.b16 %v1167
    %v1214 = vunpack.c.l.b16 %v1168
    %v1215 = vpack.c.b16 %v1214, %v1213
    %1217 = vmatpush.bf16.msra.mxu0 0
    %1218 = vmatpush.bf16.msra.mxu0 0
    %1219 = vmatpush.bf16.msra.mxu0 0
    %1220 = vmatpush.bf16.msra.mxu0 0
    %1221 = vmatpush.bf16.msra.mxu0 0
    %1222 = vmatpush.bf16.msra.mxu0 0
    %1223 = vmatpush.bf16.msra.mxu0 0
    %1224 = vmatpush.bf16.msra.mxu0 %v1215
    %1225 = vmatmul.bf16.gmra.mxu0 %v1114
    %v1226 = vpop.f32.mrf.mxu0
    %v1227 = vadd.f32 %v1108, %v1226
    %v1228 = vpop.f32.mrf.mxu0
    %v1229 = vadd.f32 %v1110, %v1228
    %1230 = vdwg.mxu0
    %v1233 = vunpack.c.l.b16 %v1169
    %v1234 = vunpack.c.l.b16 %v1170
    %v1235 = vpack.c.b16 %v1234, %v1233
    %1237 = vmatpush.bf16.msra.mxu0 0
    %1238 = vmatpush.bf16.msra.mxu0 0
    %1239 = vmatpush.bf16.msra.mxu0 0
    %1240 = vmatpush.bf16.msra.mxu0 0
    %1241 = vmatpush.bf16.msra.mxu0 0
    %1242 = vmatpush.bf16.msra.mxu0 0
    %1243 = vmatpush.bf16.msra.mxu0 0
    %1244 = vmatpush.bf16.msra.mxu0 %v1235
    %1245 = vmatmul.bf16.gmra.mxu0 %v1147
    %v1246 = vpop.f32.mrf.mxu0
    %v1247 = vadd.f32 %v1141, %v1246
    %v1248 = vpop.f32.mrf.mxu0
    %v1249 = vadd.f32 %v1143, %v1248
    %1250 = vdwg.mxu0
    %v1251 = vpack.c.bf16 %v1187, %v1187
    %v1252 = vpack.c.bf16 %v1189, %v1189
    %v1253 = vpack.c.bf16 %v1207, %v1207
    %v1254 = vpack.c.bf16 %v1209, %v1209
    %v1255 = vpack.c.bf16 %v1227, %v1227
    %v1256 = vpack.c.bf16 %v1229, %v1229
    %v1257 = vpack.c.bf16 %v1247, %v1247
    %v1258 = vpack.c.bf16 %v1249, %v1249
    %v1261 = vunpack.c.l.b16 %v1251
    %v1262 = vunpack.c.l.b16 %v1252
    %v1263 = vpack.c.b16 %v1262, %v1261
    %1265 = vmatpush.bf16.msra.mxu0 0
    %1266 = vmatpush.bf16.msra.mxu0 0
    %1267 = vmatpush.bf16.msra.mxu0 0
    %1268 = vmatpush.bf16.msra.mxu0 0
    %1269 = vmatpush.bf16.msra.mxu0 0
    %1270 = vmatpush.bf16.msra.mxu0 0
    %1271 = vmatpush.bf16.msra.mxu0 0
    %1272 = vmatpush.bf16.msra.mxu0 %v1263
    %1273 = vmatmul.bf16.gmra.mxu0 %v1048
    %v1274 = vpop.f32.mrf.mxu0
    %v1275 = vadd.f32 %v1042, %v1274
    %v1276 = vpop.f32.mrf.mxu0
    %v1277 = vadd.f32 %v1044, %v1276
    %1278 = vdwg.mxu0
    %v1281 = vunpack.c.l.b16 %v1253
    %v1282 = vunpack.c.l.b16 %v1254
    %v1283 = vpack.c.b16 %v1282, %v1281
    %1285 = vmatpush.bf16.msra.mxu0 0
    %1286 = vmatpush.bf16.msra.mxu0 0
    %1287 = vmatpush.bf16.msra.mxu0 0
    %1288 = vmatpush.bf16.msra.mxu0 0
    %1289 = vmatpush.bf16.msra.mxu0 0
    %1290 = vmatpush.bf16.msra.mxu0 0
    %1291 = vmatpush.bf16.msra.mxu0 0
    %1292 = vmatpush.bf16.msra.mxu0 %v1283
    %1293 = vmatmul.bf16.gmra.mxu0 %v1081
    %v1294 = vpop.f32.mrf.mxu0
    %v1295 = vadd.f32 %v1075, %v1294
    %v1296 = vpop.f32.mrf.mxu0
    %v1297 = vadd.f32 %v1077, %v1296
    %1298 = vdwg.mxu0
    %v1301 = vunpack.c.l.b16 %v1255
    %v1302 = vunpack.c.l.b16 %v1256
    %v1303 = vpack.c.b16 %v1302, %v1301
    %1305 = vmatpush.bf16.msra.mxu0 0
    %1306 = vmatpush.bf16.msra.mxu0 0
    %1307 = vmatpush.bf16.msra.mxu0 0
    %1308 = vmatpush.bf16.msra.mxu0 0
    %1309 = vmatpush.bf16.msra.mxu0 0
    %1310 = vmatpush.bf16.msra.mxu0 0
    %1311 = vmatpush.bf16.msra.mxu0 0
    %1312 = vmatpush.bf16.msra.mxu0 %v1303
    %1313 = vmatmul.bf16.gmra.mxu0 %v1114
    %v1314 = vpop.f32.mrf.mxu0
    %v1315 = vadd.f32 %v1108, %v1314
    %v1316 = vpop.f32.mrf.mxu0
    %v1317 = vadd.f32 %v1110, %v1316
    %1318 = vdwg.mxu0
    %v1321 = vunpack.c.l.b16 %v1257
    %v1322 = vunpack.c.l.b16 %v1258
    %v1323 = vpack.c.b16 %v1322, %v1321
    %1325 = vmatpush.bf16.msra.mxu0 0
    %1326 = vmatpush.bf16.msra.mxu0 0
    %1327 = vmatpush.bf16.msra.mxu0 0
    %1328 = vmatpush.bf16.msra.mxu0 0
    %1329 = vmatpush.bf16.msra.mxu0 0
    %1330 = vmatpush.bf16.msra.mxu0 0
    %1331 = vmatpush.bf16.msra.mxu0 0
    %1332 = vmatpush.bf16.msra.mxu0 %v1323
    %1333 = vmatmul.bf16.gmra.mxu0 %v1147
    %v1334 = vpop.f32.mrf.mxu0
    %v1335 = vadd.f32 %v1141, %v1334
    %v1336 = vpop.f32.mrf.mxu0
    %v1337 = vadd.f32 %v1143, %v1336
    %1338 = vdwg.mxu0
    %1341 = vrot.lane.b32.xlu0 %v1295, 8
    %v1342 = vpop.permute.xlu0 %1341
    %1343 = vrot.lane.b32.xlu0 %v1297, 8
    %v1344 = vpop.permute.xlu0 %1343
    %1349 = vrot.lane.b32.xlu0 %v1315, 16
    %v1350 = vpop.permute.xlu0 %1349
    %1351 = vrot.lane.b32.xlu0 %v1317, 16
    %v1352 = vpop.permute.xlu0 %1351
    %1357 = vrot.lane.b32.xlu0 %v1335, 24
    %v1358 = vpop.permute.xlu0 %1357
    %1359 = vrot.lane.b32.xlu0 %v1337, 24
    %v1360 = vpop.permute.xlu0 %1359
    %v1363 = vsel %vm230, %v1275, %v1342
    %v1364 = vsel %vm230, %v1277, %v1344
    %v1365 = vsel %vm878, %v1363, %v1350
    %v1366 = vsel %vm878, %v1364, %v1352
    %vm1367 = vcmask 195584
    %v1368 = vsel %vm1367, %v1365, %v1358
    %v1369 = vsel %vm1367, %v1366, %v1360
    %v1370 = vld [vmem:[%s6] sm:$0x1]
    %v1371 = vld [vmem:[%s7] sm:$0x1]
    %v1372 = vld [vmem:[%s8] sm:$0xf]
    %v1373 = vld [vmem:[%s8 + $0x4] sm:$0xf]
    %v1374 = vld [vmem:[%s8 + $0x8] sm:$0xf]
    %v1375 = vld [vmem:[%s8 + $0xc] sm:$0xf]
    %v1376 = vld [vmem:[%s9] sm:$0x1]
    %v1377 = vld [vmem:[%s10] sm:$0xf]
    %v1378 = vld [vmem:[%s10 + $0x4] sm:$0xf]
    %v1379 = vld [vmem:[%s10 + $0x8] sm:$0xf]
    %v1380 = vld [vmem:[%s10 + $0xc] sm:$0xf]
    %v1381 = vld [vmem:[%s10 + $0x10] sm:$0xf]
    %v1382 = vld [vmem:[%s10 + $0x14] sm:$0xf]
    %v1383 = vld [vmem:[%s10 + $0x18] sm:$0xf]
    %v1384 = vld [vmem:[%s10 + $0x1c] sm:$0xf]
    %v1385 = vld [vmem:[%s10 + $0x20] sm:$0xf]
    %v1386 = vld [vmem:[%s10 + $0x24] sm:$0xf]
    %v1387 = vld [vmem:[%s10 + $0x28] sm:$0xf]
    %v1388 = vld [vmem:[%s10 + $0x2c] sm:$0xf]
    %v1389 = vld [vmem:[%s10 + $0x30] sm:$0xf]
    %v1390 = vld [vmem:[%s10 + $0x34] sm:$0xf]
    %v1391 = vld [vmem:[%s10 + $0x38] sm:$0xf]
    %v1392 = vld [vmem:[%s10 + $0x3c] sm:$0xf]
    %v1393 = vld [vmem:[%s11] sm:$0x1]
    %v1394 = vld [vmem:[%s12] sm:$0x1]
    %v1395 = vld [vmem:[%s13] sm:$0x1]
    %v1396 = vadd.f32 %v1368, %v79
    %v1397 = vadd.f32 %v1369, %v80
    %v1398 = vsel %vm102, %v1396, 0.0
    %1399 = vadd.xlane.f32.xlu0 %v1398
    %v1400 = vpop.xlane.xlu0 %1399
    %v1401 = vsel %vm102, %v1397, 0.0
    %1402 = vadd.xlane.f32.xlu0 %v1401
    %v1403 = vpop.xlane.xlu0 %1402
    %v1404 = vrcp.pop 32.0
    %v1405 = vmul.f32 32.0, %v1404
    %v1406 = vsub.f32 1.0, %v1405
    %v1407 = vmul.f32 %v1404, %v1406
    %v1408 = vadd.f32 %v1404, %v1407
    %vm1409 = vweird.f32 %v1404
    %v1410 = vsel %vm1409, %v1404, %v1408
    %v1411 = vmul.f32 %v1400, %v1410
    %v1412 = vmul.f32 %v1403, %v1410
    %v1413 = vsub.f32 %v1396, %v1411
    %v1414 = vsub.f32 %v1397, %v1412
    %v1415 = vmul.f32 %v1413, %v1413
    %v1416 = vmul.f32 %v1414, %v1414
    %v1417 = vsel %vm102, %v1415, 0.0
    %1418 = vadd.xlane.f32.xlu0 %v1417
    %v1419 = vpop.xlane.xlu0 %1418
    %v1420 = vsel %vm102, %v1416, 0.0
    %1421 = vadd.xlane.f32.xlu0 %v1420
    %v1422 = vpop.xlane.xlu0 %1421
    %v1423 = vmul.f32 %v1419, %v1410
    %v1424 = vmul.f32 %v1422, %v1410
    %v1425 = vadd.f32 %v1423, 1e-05
    %v1426 = vadd.f32 %v1424, 1e-05
    %v1427 = vrsqrt.pop %v1425
    %v1428 = vmul.f32 %v1427, %v1425
    %v1429 = vmul.f32 %v1428, %v1427
    %v1430 = vmul.f32 0.5, %v1429
    %v1431 = vsub.f32 1.5, %v1430
    %v1432 = vmul.f32 %v1427, %v1431
    %vm1433 = vweird.f32 %v1425
    %vm1434 = vweird.f32 %v1427
    %vm1435 = vmor %vm1433, %vm1434
    %v1436 = vsel %vm1435, %v1427, %v1432
    %v1437 = vrsqrt.pop %v1426
    %v1438 = vmul.f32 %v1437, %v1426
    %v1439 = vmul.f32 %v1438, %v1437
    %v1440 = vmul.f32 0.5, %v1439
    %v1441 = vsub.f32 1.5, %v1440
    %v1442 = vmul.f32 %v1437, %v1441
    %vm1443 = vweird.f32 %v1426
    %vm1444 = vweird.f32 %v1437
    %vm1445 = vmor %vm1443, %vm1444
    %v1446 = vsel %vm1445, %v1437, %v1442
    %v1447 = vmul.f32 %v1413, %v1436
    %v1448 = vmul.f32 %v1414, %v1446
    %v1450 = vperm.slane %v1370, 0
    %v1452 = vmul.f32 %v1447, %v1450
    %v1453 = vmul.f32 %v1448, %v1450
    %v1455 = vperm.slane %v1371, 0
    %v1457 = vadd.f32 %v1452, %v1455
    %v1458 = vadd.f32 %v1453, %v1455
    %v1459 = vpack.c.bf16 %v1458, %v1457
    %v1461 = vperm.slane %v1376, 0
    %v1467 = vunpack.c.l.b16 %v1372
    %v1468 = vunpack.c.l.b16 %v1373
    %v1469 = vunpack.c.l.b16 %v1374
    %v1470 = vunpack.c.l.b16 %v1375
    %v1471 = vpack.c.b16 %v1468, %v1467
    %v1472 = vpack.c.b16 %v1470, %v1469
    %v1476 = vsel %vm102, %v1459, 0
    %1478 = vmatpush.bf16.msra.mxu0 0
    %1479 = vmatpush.bf16.msra.mxu0 0
    %1480 = vmatpush.bf16.msra.mxu0 0
    %1481 = vmatpush.bf16.msra.mxu0 0
    %1482 = vmatpush.bf16.msra.mxu0 0
    %1483 = vmatpush.bf16.msra.mxu0 0
    %1484 = vmatpush.bf16.msra.mxu0 %v1472
    %1485 = vmatpush.bf16.msra.mxu0 %v1471
    %1486 = vmatmul.bf16.gmra.mxu0 %v1476
    %v1487 = vpop.f32.mrf.mxu0
    %v1488 = vadd.f32 %v1461, %v1487
    %v1489 = vpop.f32.mrf.mxu0
    %v1490 = vadd.f32 %v1461, %v1489
    %1491 = vdwg.mxu0
    %v1492 = vmax.f32 %v1488, 0.0
    %v1493 = vmax.f32 %v1490, 0.0
    %v1494 = vpack.c.bf16 %v1493, %v1492
    %v1496 = vperm.slane %v1393, 0
    %v1514 = vunpack.c.l.b16 %v1377
    %v1515 = vunpack.c.l.b16 %v1378
    %v1516 = vunpack.c.l.b16 %v1379
    %v1517 = vunpack.c.l.b16 %v1380
    %v1518 = vunpack.c.l.b16 %v1381
    %v1519 = vunpack.c.l.b16 %v1382
    %v1520 = vunpack.c.l.b16 %v1383
    %v1521 = vunpack.c.l.b16 %v1384
    %v1522 = vunpack.c.l.b16 %v1385
    %v1523 = vunpack.c.l.b16 %v1386
    %v1524 = vunpack.c.l.b16 %v1387
    %v1525 = vunpack.c.l.b16 %v1388
    %v1526 = vunpack.c.l.b16 %v1389
    %v1527 = vunpack.c.l.b16 %v1390
    %v1528 = vunpack.c.l.b16 %v1391
    %v1529 = vunpack.c.l.b16 %v1392
    %v1530 = vpack.c.b16 %v1515, %v1514
    %v1531 = vpack.c.b16 %v1517, %v1516
    %v1532 = vpack.c.b16 %v1519, %v1518
    %v1533 = vpack.c.b16 %v1521, %v1520
    %v1534 = vpack.c.b16 %v1523, %v1522
    %v1535 = vpack.c.b16 %v1525, %v1524
    %v1536 = vpack.c.b16 %v1527, %v1526
    %v1537 = vpack.c.b16 %v1529, %v1528
    %1546 = vmatpush.bf16.msra.mxu0 %v1537
    %1547 = vmatpush.bf16.msra.mxu0 %v1536
    %1548 = vmatpush.bf16.msra.mxu0 %v1535
    %1549 = vmatpush.bf16.msra.mxu0 %v1534
    %1550 = vmatpush.bf16.msra.mxu0 %v1533
    %1551 = vmatpush.bf16.msra.mxu0 %v1532
    %1552 = vmatpush.bf16.msra.mxu0 %v1531
    %1553 = vmatpush.bf16.msra.mxu0 %v1530
    %1554 = vmatmul.bf16.gmra.mxu0 %v1494
    %v1555 = vpop.f32.mrf.mxu0
    %v1556 = vadd.f32 %v1496, %v1555
    %v1557 = vpop.f32.mrf.mxu0
    %v1558 = vadd.f32 %v1496, %v1557
    %1559 = vdwg.mxu0
    %v1560 = vadd.f32 %v1457, %v1556
    %v1561 = vadd.f32 %v1458, %v1558
    %v1562 = vsel %vm102, %v1560, 0.0
    %1563 = vadd.xlane.f32.xlu0 %v1562
    %v1564 = vpop.xlane.xlu0 %1563
    %v1565 = vsel %vm102, %v1561, 0.0
    %1566 = vadd.xlane.f32.xlu0 %v1565
    %v1567 = vpop.xlane.xlu0 %1566
    %v1568 = vmul.f32 %v1564, %v1410
    %v1569 = vmul.f32 %v1567, %v1410
    %v1570 = vsub.f32 %v1560, %v1568
    %v1571 = vsub.f32 %v1561, %v1569
    %v1572 = vmul.f32 %v1570, %v1570
    %v1573 = vmul.f32 %v1571, %v1571
    %v1574 = vsel %vm102, %v1572, 0.0
    %1575 = vadd.xlane.f32.xlu0 %v1574
    %v1576 = vpop.xlane.xlu0 %1575
    %v1577 = vsel %vm102, %v1573, 0.0
    %1578 = vadd.xlane.f32.xlu0 %v1577
    %v1579 = vpop.xlane.xlu0 %1578
    %v1580 = vmul.f32 %v1576, %v1410
    %v1581 = vmul.f32 %v1579, %v1410
    %v1582 = vadd.f32 %v1580, 1e-05
    %v1583 = vadd.f32 %v1581, 1e-05
    %v1584 = vrsqrt.pop %v1582
    %v1585 = vmul.f32 %v1584, %v1582
    %v1586 = vmul.f32 %v1585, %v1584
    %v1587 = vmul.f32 0.5, %v1586
    %v1588 = vsub.f32 1.5, %v1587
    %v1589 = vmul.f32 %v1584, %v1588
    %vm1590 = vweird.f32 %v1582
    %vm1591 = vweird.f32 %v1584
    %vm1592 = vmor %vm1590, %vm1591
    %v1593 = vsel %vm1592, %v1584, %v1589
    %v1594 = vrsqrt.pop %v1583
    %v1595 = vmul.f32 %v1594, %v1583
    %v1596 = vmul.f32 %v1595, %v1594
    %v1597 = vmul.f32 0.5, %v1596
    %v1598 = vsub.f32 1.5, %v1597
    %v1599 = vmul.f32 %v1594, %v1598
    %vm1600 = vweird.f32 %v1583
    %vm1601 = vweird.f32 %v1594
    %vm1602 = vmor %vm1600, %vm1601
    %v1603 = vsel %vm1602, %v1594, %v1599
    %v1604 = vmul.f32 %v1570, %v1593
    %v1605 = vmul.f32 %v1571, %v1603
    %v1607 = vperm.slane %v1394, 0
    %v1609 = vmul.f32 %v1604, %v1607
    %v1610 = vmul.f32 %v1605, %v1607
    %v1612 = vperm.slane %v1395, 0
    %v1614 = vadd.f32 %v1609, %v1612
    %v1615 = vadd.f32 %v1610, %v1612
    %1616 = vst.msk [vmem:[#allocation7] sm:$0xff] %vm102, %v1614
    %1617 = vst.msk [vmem:[#allocation7 + $0x8] sm:$0xff] %vm102, %v1615
    // Predicated region
    $region66: #{tpu_custom_call.1} parent=1 // pred_check
      _
    $region67: #{tpu_custom_call.1} parent=1 // pred_check_branch
      %1619 = sbr.rel (0) target = $region69
    $region68: #{tpu_custom_call.1} parent=1 // pred_region
      %1621 = vsyncadd [#allocation4], 0
      %s1622 = sshll.u32 [#allocation7], 4
      %s1623 = int_to_ptr.vmem [resolvable:$true] %s1622
      %s1624 = sshll.u32 %s14, 4
      %s1625 = int_to_ptr.hbm [resolvable:$true] %s1624
      %1630 = dma.vmem_to_hbm [thread:$0]  %s1623, 256, %s1625, [#allocation4], 128, 128, 8
    $region69: #{tpu_custom_call.1} parent=1 // pred_fallthru
      _
    // Predicated region
    $region70: #{tpu_custom_call.1} parent=1 // pred_check
      _
    $region71: #{tpu_custom_call.1} parent=1 // pred_check_branch
      %1632 = sbr.rel (0) target = $region73
    $region72: #{tpu_custom_call.1} parent=1 // pred_region
      %1634 = dma.done [#allocation4], 256
    $region73: #{tpu_custom_call.1} parent=1 // pred_fallthru
      _
    %1635 = vsyncpa [#allocation3], 1
    %1636 = vsyncpa [#allocation6], 1
    %1637 = vsyncpa [#allocation4], 1

</llo_original>
